<compile_context>
chip_gen: v6e
topology: v6e:2x2x1
jax: 0.10.0
libtpu: 0.0.40
codegen_flags: <defaults>
</compile_context>

<pallas_src>
import functools

import jax
import jax.numpy as jnp
from jax import lax
from jax.experimental import pallas as pl
from jax.experimental.pallas import tpu as pltpu

BN_EPS = 1e-5


def _gelu_exact(y):
    # nn.GELU() default is the exact erf-based GELU. Keep in f32.
    return 0.5 * y * (1.0 + lax.erf(y * 0.7071067811865476))


def _conv3_bias_gelu(x, w_ref, b_ref):
    """Conv1d(k=3, stride=1, pad=1) + folded bias + GELU for one sample.

    x:     (C_in, L), matmul compute dtype (bf16 or f32), L on the lane axis.
    w_ref: (3, C_out, C_in) folded conv weights (tap, out, in).
    b_ref: (C_out, 1) folded bias, f32.
    Returns (C_out, L) f32.
    """
    c_in, length = x.shape
    col = lax.broadcasted_iota(jnp.int32, (c_in, length), 1)
    zero = jnp.zeros((), x.dtype)
    # Tap k contributes  w[:, :, k] @ x[:, l + k - 1]  (zero outside [0, L)).
    x_prev = jnp.where(col == 0, zero, pltpu.roll(x, shift=1, axis=1))            # x[:, l-1]
    x_next = jnp.where(col == length - 1, zero,
                       pltpu.roll(x, shift=length - 1, axis=1))                   # x[:, l+1]
    acc = jnp.dot(w_ref[0], x_prev, preferred_element_type=jnp.float32)
    acc = acc + jnp.dot(w_ref[1], x, preferred_element_type=jnp.float32)
    acc = acc + jnp.dot(w_ref[2], x_next, preferred_element_type=jnp.float32)
    return _gelu_exact(acc + b_ref[...])


def _old_unet_down_kernel(x_ref, w1_ref, b1_ref, w2_ref, b2_ref, se_ref, so_ref,
                          out_ref, *, is_res, same_channels):
    b_tile = x_ref.shape[0]
    mm_dtype = w1_ref.dtype
    s_even = se_ref[...]          # (L, L//2) exact 0/1 selectors for the pooling
    s_odd = so_ref[...]
    for i in range(b_tile):       # static unroll over the folded batch elements
        x = x_ref[i].astype(mm_dtype)                         # (Cin, L)
        x1 = _conv3_bias_gelu(x, w1_ref, b1_ref)              # (Cout, L) f32
        x2 = _conv3_bias_gelu(x1.astype(mm_dtype), w2_ref, b2_ref)
        if is_res:  # ResidualConvBlock(is_res=True) path; unused by oldUnetDown.
            res = x_ref[i].astype(jnp.float32) if same_channels else x1
            blk = (res + x2) * (1.0 / 1.414)
        else:
            blk = x2
        # Fused MaxPool1d(2): pick even / odd columns with exact 0/1 matmuls, max them.
        even = jnp.dot(blk, s_even, preferred_element_type=jnp.float32)
        odd = jnp.dot(blk, s_odd, preferred_element_type=jnp.float32)
        out_ref[i] = jnp.maximum(even, odd).astype(out_ref.dtype)


def _fold_bn(w_oik, b, g, be, m, v):
    """Fold eval-mode BatchNorm + conv bias into the conv weights/bias."""
    inv_std = lax.rsqrt(v + BN_EPS)
    scale = g * inv_std                               # (Cout,)
    w_f = w_oik * scale[:, None, None]                # (Cout, Cin, 3)
    b_f = (b - m) * scale + be                        # (Cout,)
    return w_f, b_f


def _pick_batch_tile(n):
    # Fold a few samples per grid step to amortize per-step overhead, but keep
    # >= 2 grid steps so both v7x TensorCores get work (no-op on v5e/v6e).
    for b in (8, 4, 2):
        if n % b == 0 and n // b >= 2:
            return b
    return 1


def old_unet_down_pallas(x_ncl, params, *, is_res=False, compute_dtype=jnp.bfloat16):
    """x_ncl: (N, Cin, L) float32. Returns (N, Cout, L // 2) — oldUnetDown forward."""
    n, cin, length = x_ncl.shape
    cout = params["w1_oik"].shape[0]
    l_out = length // 2
    same_channels = cin == cout

    # Fold BN + bias once, outside the kernel; lay weights out as (tap, out, in).
    w1f, b1f = _fold_bn(params["w1_oik"], params["b1"], params["g1"],
                        params["be1"], params["m1"], params["v1"])
    w2f, b2f = _fold_bn(params["w2_oik"], params["b2"], params["g2"],
                        params["be2"], params["m2"], params["v2"])
    w1_koi = jnp.transpose(w1f, (2, 0, 1)).astype(compute_dtype)   # (3, Cout, Cin)
    w2_koi = jnp.transpose(w2f, (2, 0, 1)).astype(compute_dtype)   # (3, Cout, Cout)
    b1c = b1f.reshape(cout, 1).astype(jnp.float32)
    b2c = b2f.reshape(cout, 1).astype(jnp.float32)

    # Exact 0/1 selection matrices for the fused MaxPool1d(2).
    li = jnp.arange(length)[:, None]
    pi = jnp.arange(l_out)[None, :]
    s_even = (li == 2 * pi).astype(jnp.float32)        # (L, L//2)
    s_odd = (li == 2 * pi + 1).astype(jnp.float32)

    b_tile = _pick_batch_tile(n)
    grid = (n // b_tile,)

    kernel = functools.partial(_old_unet_down_kernel,
                               is_res=is_res, same_channels=same_channels)

    return pl.pallas_call(
        kernel,
        out_shape=jax.ShapeDtypeStruct((n, cout, l_out), x_ncl.dtype),
        grid_spec=pltpu.PrefetchScalarGridSpec(
            num_scalar_prefetch=0,
            grid=grid,
            in_specs=[
                pl.BlockSpec((b_tile, cin, length), lambda i: (i, 0, 0)),
                pl.BlockSpec((3, cout, cin), lambda i: (0, 0, 0)),
                pl.BlockSpec((cout, 1), lambda i: (0, 0)),
                pl.BlockSpec((3, cout, cout), lambda i: (0, 0, 0)),
                pl.BlockSpec((cout, 1), lambda i: (0, 0)),
                pl.BlockSpec((length, l_out), lambda i: (0, 0)),
                pl.BlockSpec((length, l_out), lambda i: (0, 0)),
            ],
            out_specs=pl.BlockSpec((b_tile, cout, l_out), lambda i: (i, 0, 0)),
        ),
        compiler_params=pltpu.CompilerParams(
            dimension_semantics=("parallel",)),
    )(x_ncl, w1_koi, b1c, w2_koi, b2c, s_even, s_odd)


def make_params(key, cin, cout):
    """Deterministic synthetic parameters in PyTorch layouts."""
    ks = jax.random.split(key, 12)
    p = {}
    # torch Conv1d weight layout: (Cout, Cin, K)
    p["w1_oik"] = jax.random.normal(ks[0], (cout, cin, 3), jnp.float32) * 0.2
    p["w2_oik"] = jax.random.normal(ks[1], (cout, cout, 3), jnp.float32) * 0.2
    p["b1"] = jax.random.normal(ks[2], (cout,), jnp.float32) * 0.1
    p["b2"] = jax.random.normal(ks[3], (cout,), jnp.float32) * 0.1
    # BatchNorm affine params / running stats (eval mode)
    p["g1"] = 1.0 + 0.1 * jax.random.normal(ks[4], (cout,), jnp.float32)
    p["be1"] = 0.1 * jax.random.normal(ks[5], (cout,), jnp.float32)
    p["m1"] = 0.1 * jax.random.normal(ks[6], (cout,), jnp.float32)
    p["v1"] = 1.0 + 0.1 * jax.nn.softplus(jax.random.normal(ks[7], (cout,), jnp.float32))
    p["g2"] = 1.0 + 0.1 * jax.random.normal(ks[8], (cout,), jnp.float32)
    p["be2"] = 0.1 * jax.random.normal(ks[9], (cout,), jnp.float32)
    p["m2"] = 0.1 * jax.random.normal(ks[10], (cout,), jnp.float32)
    p["v2"] = 1.0 + 0.1 * jax.nn.softplus(jax.random.normal(ks[11], (cout,), jnp.float32))
    return p


def reference(x_ncl, p):
    """Pure-JAX reference for oldUnetDown.forward (eval-mode BN)."""
    def conv_bn_gelu(x, w_oik, b, g, be, m, v):
        y = lax.conv_general_dilated(
            x, w_oik, window_strides=(1,), padding=((1, 1),),
            dimension_numbers=("NCH", "OIH", "NCH"))
        y = y + b[None, :, None]
        y = (y - m[None, :, None]) * lax.rsqrt(v[None, :, None] + BN_EPS)
        y = y * g[None, :, None] + be[None, :, None]
        return 0.5 * y * (1.0 + lax.erf(y / jnp.sqrt(2.0)))

    x1 = conv_bn_gelu(x_ncl, p["w1_oik"], p["b1"], p["g1"], p["be1"], p["m1"], p["v1"])
    x2 = conv_bn_gelu(x1, p["w2_oik"], p["b2"], p["g2"], p["be2"], p["m2"], p["v2"])
    # ResidualConvBlock default is_res=False -> output is x2; then MaxPool1d(2).
    n, c, length = x2.shape
    l_out = length // 2
    return x2[:, :, :2 * l_out].reshape(n, c, l_out, 2).max(axis=-1)


if __name__ == "__main__":
    key = jax.random.PRNGKey(0)
    k_x, k_p = jax.random.split(key)

    N, C_IN, C_OUT, L = 4, 4, 8, 16
    x = jax.random.normal(k_x, (N, C_IN, L), jnp.float32)
    params = make_params(k_p, C_IN, C_OUT)

    ref = reference(x, params)

    # Exactness check: f32 matmul path.
    out_f32 = jax.block_until_ready(
        old_unet_down_pallas(x, params, compute_dtype=jnp.float32))
    assert out_f32.shape == (N, C_OUT, L // 2)
    assert jnp.allclose(out_f32, ref, rtol=1e-4, atol=1e-4)

    # Performance path: bf16 matmul operands, f32 accumulation / elementwise.
    out_bf16 = jax.block_until_ready(
        old_unet_down_pallas(x, params, compute_dtype=jnp.bfloat16))
    assert out_bf16.shape == (N, C_OUT, L // 2)
    assert jnp.allclose(out_bf16, ref, rtol=5e-2, atol=5e-2)

    print("KERNEL_OK")
</pallas_src>

<mosaic_0001>
module attributes {stable_mosaic.version = 11 : i64} {
  func.func @_old_unet_down_kernel(%arg0: i32, %arg1: memref<2x4x16xf32, #tpu.memory_space<vmem>>, %arg2: memref<3x8x4xf32, #tpu.memory_space<vmem>>, %arg3: memref<8x1xf32, #tpu.memory_space<vmem>>, %arg4: memref<3x8x8xf32, #tpu.memory_space<vmem>>, %arg5: memref<8x1xf32, #tpu.memory_space<vmem>>, %arg6: memref<16x8xf32, #tpu.memory_space<vmem>>, %arg7: memref<16x8xf32, #tpu.memory_space<vmem>>, %arg8: memref<2x8x8xf32, #tpu.memory_space<vmem>>) attributes {dimension_semantics = [#tpu.dimension_semantics<parallel>], iteration_bounds = array<i64: 2>, scalar_prefetch = 0 : i64, scratch_operands = 0 : i64, tpu.core_type = #tpu.core_type<tc>, window_params = [{transform_indices = @transform_0, window_bounds = array<i64: 2, 4, 16>}, {pipeline_mode = #tpu.pipeline_mode<synchronous>, transform_indices = @transform_1, window_bounds = array<i64: 3, 8, 4>}, {pipeline_mode = #tpu.pipeline_mode<synchronous>, transform_indices = @transform_2, window_bounds = array<i64: 8, 1>}, {pipeline_mode = #tpu.pipeline_mode<synchronous>, transform_indices = @transform_3, window_bounds = array<i64: 3, 8, 8>}, {pipeline_mode = #tpu.pipeline_mode<synchronous>, transform_indices = @transform_4, window_bounds = array<i64: 8, 1>}, {pipeline_mode = #tpu.pipeline_mode<synchronous>, transform_indices = @transform_5, window_bounds = array<i64: 16, 8>}, {pipeline_mode = #tpu.pipeline_mode<synchronous>, transform_indices = @transform_6, window_bounds = array<i64: 16, 8>}, {transform_indices = @transform_7, window_bounds = array<i64: 2, 8, 8>}]} {
    %c0 = arith.constant 0 : index
    %c0_0 = arith.constant 0 : index
    %0 = vector.load %arg6[%c0, %c0_0] : memref<16x8xf32, #tpu.memory_space<vmem>>, vector<16x8xf32>
    %c0_1 = arith.constant 0 : index
    %c0_2 = arith.constant 0 : index
    %1 = vector.load %arg7[%c0_1, %c0_2] : memref<16x8xf32, #tpu.memory_space<vmem>>, vector<16x8xf32>
    %c0_3 = arith.constant 0 : index
    %c0_4 = arith.constant 0 : index
    %c0_5 = arith.constant 0 : index
    %2 = vector.load %arg1[%c0_3, %c0_4, %c0_5] : memref<2x4x16xf32, #tpu.memory_space<vmem>>, vector<1x4x16xf32>
    %3 = vector.shape_cast %2 : vector<1x4x16xf32> to vector<4x16xf32>
    %4 = tpu.iota {dimensions = array<i32: 1>} : vector<4x16xi32>
    %c0_i32 = arith.constant 0 : i32
    %5 = vector.broadcast %c0_i32 : i32 to vector<4x16xi32>
    %6 = arith.cmpi eq, %4, %5 : vector<4x16xi32>
    %c1_i32 = arith.constant 1 : i32
    %7 = tpu.dynamic_rotate %3 by %c1_i32 dim 1 : vector<4x16xf32>, i32 -> vector<4x16xf32>
    %cst = arith.constant 0.000000e+00 : f32
    %8 = vector.broadcast %cst : f32 to vector<4x16xf32>
    %9 = arith.select %6, %8, %7 : vector<4x16xi1>, vector<4x16xf32>
    %c15_i32 = arith.constant 15 : i32
    %10 = vector.broadcast %c15_i32 : i32 to vector<4x16xi32>
    %11 = arith.cmpi eq, %4, %10 : vector<4x16xi32>
    %c15_i32_6 = arith.constant 15 : i32
    %12 = tpu.dynamic_rotate %3 by %c15_i32_6 dim 1 : vector<4x16xf32>, i32 -> vector<4x16xf32>
    %cst_7 = arith.constant 0.000000e+00 : f32
    %13 = vector.broadcast %cst_7 : f32 to vector<4x16xf32>
    %14 = arith.select %11, %13, %12 : vector<4x16xi1>, vector<4x16xf32>
    %c0_8 = arith.constant 0 : index
    %c0_9 = arith.constant 0 : index
    %c0_10 = arith.constant 0 : index
    %15 = vector.load %arg2[%c0_8, %c0_9, %c0_10] : memref<3x8x4xf32, #tpu.memory_space<vmem>>, vector<1x8x4xf32>
    %16 = vector.shape_cast %15 : vector<1x8x4xf32> to vector<8x4xf32>
    %cst_11 = arith.constant dense<0.000000e+00> : vector<8x16xf32>
    %17 = tpu.matmul %16, %9, %cst_11 {dimension_numbers = #tpu.dot_dimension_numbers<[1], [0], [0], [1], [0, 0, 1, 1], [], []>} : vector<8x4xf32>, vector<4x16xf32>, vector<8x16xf32> -> vector<8x16xf32>
    %c1 = arith.constant 1 : index
    %c0_12 = arith.constant 0 : index
    %c0_13 = arith.constant 0 : index
    %18 = vector.load %arg2[%c1, %c0_12, %c0_13] : memref<3x8x4xf32, #tpu.memory_space<vmem>>, vector<1x8x4xf32>
    %19 = vector.shape_cast %18 : vector<1x8x4xf32> to vector<8x4xf32>
    %cst_14 = arith.constant dense<0.000000e+00> : vector<8x16xf32>
    %20 = tpu.matmul %19, %3, %cst_14 {dimension_numbers = #tpu.dot_dimension_numbers<[1], [0], [0], [1], [0, 0, 1, 1], [], []>} : vector<8x4xf32>, vector<4x16xf32>, vector<8x16xf32> -> vector<8x16xf32>
    %21 = arith.addf %17, %20 : vector<8x16xf32>
    %c2 = arith.constant 2 : index
    %c0_15 = arith.constant 0 : index
    %c0_16 = arith.constant 0 : index
    %22 = vector.load %arg2[%c2, %c0_15, %c0_16] : memref<3x8x4xf32, #tpu.memory_space<vmem>>, vector<1x8x4xf32>
    %23 = vector.shape_cast %22 : vector<1x8x4xf32> to vector<8x4xf32>
    %cst_17 = arith.constant dense<0.000000e+00> : vector<8x16xf32>
    %24 = tpu.matmul %23, %14, %cst_17 {dimension_numbers = #tpu.dot_dimension_numbers<[1], [0], [0], [1], [0, 0, 1, 1], [], []>} : vector<8x4xf32>, vector<4x16xf32>, vector<8x16xf32> -> vector<8x16xf32>
    %25 = arith.addf %21, %24 : vector<8x16xf32>
    %c0_18 = arith.constant 0 : index
    %c0_19 = arith.constant 0 : index
    %26 = vector.load %arg3[%c0_18, %c0_19] : memref<8x1xf32, #tpu.memory_space<vmem>>, vector<8x1xf32>
    %27 = vector.broadcast %26 : vector<8x1xf32> to vector<8x16xf32>
    %28 = arith.addf %25, %27 : vector<8x16xf32>
    %cst_20 = arith.constant 5.000000e-01 : f32
    %29 = vector.broadcast %cst_20 : f32 to vector<8x16xf32>
    %30 = arith.mulf %29, %28 : vector<8x16xf32>
    %cst_21 = arith.constant 0.707106769 : f32
    %31 = vector.broadcast %cst_21 : f32 to vector<8x16xf32>
    %32 = arith.mulf %28, %31 : vector<8x16xf32>
    %33 = math.erf %32 : vector<8x16xf32>
    %cst_22 = arith.constant 1.000000e+00 : f32
    %34 = vector.broadcast %cst_22 : f32 to vector<8x16xf32>
    %35 = arith.addf %34, %33 : vector<8x16xf32>
    %36 = arith.mulf %30, %35 : vector<8x16xf32>
    %37 = tpu.iota {dimensions = array<i32: 1>} : vector<8x16xi32>
    %c0_i32_23 = arith.constant 0 : i32
    %38 = vector.broadcast %c0_i32_23 : i32 to vector<8x16xi32>
    %39 = arith.cmpi eq, %37, %38 : vector<8x16xi32>
    %c1_i32_24 = arith.constant 1 : i32
    %40 = tpu.dynamic_rotate %36 by %c1_i32_24 dim 1 : vector<8x16xf32>, i32 -> vector<8x16xf32>
    %cst_25 = arith.constant 0.000000e+00 : f32
    %41 = vector.broadcast %cst_25 : f32 to vector<8x16xf32>
    %42 = arith.select %39, %41, %40 : vector<8x16xi1>, vector<8x16xf32>
    %c15_i32_26 = arith.constant 15 : i32
    %43 = vector.broadcast %c15_i32_26 : i32 to vector<8x16xi32>
    %44 = arith.cmpi eq, %37, %43 : vector<8x16xi32>
    %c15_i32_27 = arith.constant 15 : i32
    %45 = tpu.dynamic_rotate %36 by %c15_i32_27 dim 1 : vector<8x16xf32>, i32 -> vector<8x16xf32>
    %cst_28 = arith.constant 0.000000e+00 : f32
    %46 = vector.broadcast %cst_28 : f32 to vector<8x16xf32>
    %47 = arith.select %44, %46, %45 : vector<8x16xi1>, vector<8x16xf32>
    %c0_29 = arith.constant 0 : index
    %c0_30 = arith.constant 0 : index
    %c0_31 = arith.constant 0 : index
    %48 = vector.load %arg4[%c0_29, %c0_30, %c0_31] : memref<3x8x8xf32, #tpu.memory_space<vmem>>, vector<1x8x8xf32>
    %49 = vector.shape_cast %48 : vector<1x8x8xf32> to vector<8x8xf32>
    %cst_32 = arith.constant dense<0.000000e+00> : vector<8x16xf32>
    %50 = tpu.matmul %49, %42, %cst_32 {dimension_numbers = #tpu.dot_dimension_numbers<[1], [0], [0], [1], [0, 0, 1, 1], [], []>} : vector<8x8xf32>, vector<8x16xf32>, vector<8x16xf32> -> vector<8x16xf32>
    %c1_33 = arith.constant 1 : index
    %c0_34 = arith.constant 0 : index
    %c0_35 = arith.constant 0 : index
    %51 = vector.load %arg4[%c1_33, %c0_34, %c0_35] : memref<3x8x8xf32, #tpu.memory_space<vmem>>, vector<1x8x8xf32>
    %52 = vector.shape_cast %51 : vector<1x8x8xf32> to vector<8x8xf32>
    %cst_36 = arith.constant dense<0.000000e+00> : vector<8x16xf32>
    %53 = tpu.matmul %52, %36, %cst_36 {dimension_numbers = #tpu.dot_dimension_numbers<[1], [0], [0], [1], [0, 0, 1, 1], [], []>} : vector<8x8xf32>, vector<8x16xf32>, vector<8x16xf32> -> vector<8x16xf32>
    %54 = arith.addf %50, %53 : vector<8x16xf32>
    %c2_37 = arith.constant 2 : index
    %c0_38 = arith.constant 0 : index
    %c0_39 = arith.constant 0 : index
    %55 = vector.load %arg4[%c2_37, %c0_38, %c0_39] : memref<3x8x8xf32, #tpu.memory_space<vmem>>, vector<1x8x8xf32>
    %56 = vector.shape_cast %55 : vector<1x8x8xf32> to vector<8x8xf32>
    %cst_40 = arith.constant dense<0.000000e+00> : vector<8x16xf32>
    %57 = tpu.matmul %56, %47, %cst_40 {dimension_numbers = #tpu.dot_dimension_numbers<[1], [0], [0], [1], [0, 0, 1, 1], [], []>} : vector<8x8xf32>, vector<8x16xf32>, vector<8x16xf32> -> vector<8x16xf32>
    %58 = arith.addf %54, %57 : vector<8x16xf32>
    %c0_41 = arith.constant 0 : index
    %c0_42 = arith.constant 0 : index
    %59 = vector.load %arg5[%c0_41, %c0_42] : memref<8x1xf32, #tpu.memory_space<vmem>>, vector<8x1xf32>
    %60 = vector.broadcast %59 : vector<8x1xf32> to vector<8x16xf32>
    %61 = arith.addf %58, %60 : vector<8x16xf32>
    %cst_43 = arith.constant 5.000000e-01 : f32
    %62 = vector.broadcast %cst_43 : f32 to vector<8x16xf32>
    %63 = arith.mulf %62, %61 : vector<8x16xf32>
    %cst_44 = arith.constant 0.707106769 : f32
    %64 = vector.broadcast %cst_44 : f32 to vector<8x16xf32>
    %65 = arith.mulf %61, %64 : vector<8x16xf32>
    %66 = math.erf %65 : vector<8x16xf32>
    %cst_45 = arith.constant 1.000000e+00 : f32
    %67 = vector.broadcast %cst_45 : f32 to vector<8x16xf32>
    %68 = arith.addf %67, %66 : vector<8x16xf32>
    %69 = arith.mulf %63, %68 : vector<8x16xf32>
    %cst_46 = arith.constant dense<0.000000e+00> : vector<8x8xf32>
    %70 = tpu.matmul %69, %0, %cst_46 {dimension_numbers = #tpu.dot_dimension_numbers<[1], [0], [0], [1], [0, 0, 1, 1], [], []>} : vector<8x16xf32>, vector<16x8xf32>, vector<8x8xf32> -> vector<8x8xf32>
    %cst_47 = arith.constant dense<0.000000e+00> : vector<8x8xf32>
    %71 = tpu.matmul %69, %1, %cst_47 {dimension_numbers = #tpu.dot_dimension_numbers<[1], [0], [0], [1], [0, 0, 1, 1], [], []>} : vector<8x16xf32>, vector<16x8xf32>, vector<8x8xf32> -> vector<8x8xf32>
    %72 = arith.maximumf %70, %71 : vector<8x8xf32>
    %c0_48 = arith.constant 0 : index
    %c0_49 = arith.constant 0 : index
    %c0_50 = arith.constant 0 : index
    %73 = vector.load %arg8[%c0_48, %c0_49, %c0_50] : memref<2x8x8xf32, #tpu.memory_space<vmem>>, vector<1x8x8xf32>
    %74 = vector.shape_cast %73 : vector<1x8x8xf32> to vector<8x8xf32>
    %75 = vector.shape_cast %72 : vector<8x8xf32> to vector<1x8x8xf32>
    tpu.vector_store %arg8[%c0_48, %c0_49, %c0_50], %75 {strides = array<i32>} : memref<2x8x8xf32, #tpu.memory_space<vmem>>, vector<1x8x8xf32>,
    %c1_51 = arith.constant 1 : index
    %c0_52 = arith.constant 0 : index
    %c0_53 = arith.constant 0 : index
    %76 = vector.load %arg1[%c1_51, %c0_52, %c0_53] : memref<2x4x16xf32, #tpu.memory_space<vmem>>, vector<1x4x16xf32>
    %77 = vector.shape_cast %76 : vector<1x4x16xf32> to vector<4x16xf32>
    %78 = tpu.iota {dimensions = array<i32: 1>} : vector<4x16xi32>
    %c0_i32_54 = arith.constant 0 : i32
    %79 = vector.broadcast %c0_i32_54 : i32 to vector<4x16xi32>
    %80 = arith.cmpi eq, %78, %79 : vector<4x16xi32>
    %c1_i32_55 = arith.constant 1 : i32
    %81 = tpu.dynamic_rotate %77 by %c1_i32_55 dim 1 : vector<4x16xf32>, i32 -> vector<4x16xf32>
    %cst_56 = arith.constant 0.000000e+00 : f32
    %82 = vector.broadcast %cst_56 : f32 to vector<4x16xf32>
    %83 = arith.select %80, %82, %81 : vector<4x16xi1>, vector<4x16xf32>
    %c15_i32_57 = arith.constant 15 : i32
    %84 = vector.broadcast %c15_i32_57 : i32 to vector<4x16xi32>
    %85 = arith.cmpi eq, %78, %84 : vector<4x16xi32>
    %c15_i32_58 = arith.constant 15 : i32
    %86 = tpu.dynamic_rotate %77 by %c15_i32_58 dim 1 : vector<4x16xf32>, i32 -> vector<4x16xf32>
    %cst_59 = arith.constant 0.000000e+00 : f32
    %87 = vector.broadcast %cst_59 : f32 to vector<4x16xf32>
    %88 = arith.select %85, %87, %86 : vector<4x16xi1>, vector<4x16xf32>
    %c0_60 = arith.constant 0 : index
    %c0_61 = arith.constant 0 : index
    %c0_62 = arith.constant 0 : index
    %89 = vector.load %arg2[%c0_60, %c0_61, %c0_62] : memref<3x8x4xf32, #tpu.memory_space<vmem>>, vector<1x8x4xf32>
    %90 = vector.shape_cast %89 : vector<1x8x4xf32> to vector<8x4xf32>
    %cst_63 = arith.constant dense<0.000000e+00> : vector<8x16xf32>
    %91 = tpu.matmul %90, %83, %cst_63 {dimension_numbers = #tpu.dot_dimension_numbers<[1], [0], [0], [1], [0, 0, 1, 1], [], []>} : vector<8x4xf32>, vector<4x16xf32>, vector<8x16xf32> -> vector<8x16xf32>
    %c1_64 = arith.constant 1 : index
    %c0_65 = arith.constant 0 : index
    %c0_66 = arith.constant 0 : index
    %92 = vector.load %arg2[%c1_64, %c0_65, %c0_66] : memref<3x8x4xf32, #tpu.memory_space<vmem>>, vector<1x8x4xf32>
    %93 = vector.shape_cast %92 : vector<1x8x4xf32> to vector<8x4xf32>
    %cst_67 = arith.constant dense<0.000000e+00> : vector<8x16xf32>
    %94 = tpu.matmul %93, %77, %cst_67 {dimension_numbers = #tpu.dot_dimension_numbers<[1], [0], [0], [1], [0, 0, 1, 1], [], []>} : vector<8x4xf32>, vector<4x16xf32>, vector<8x16xf32> -> vector<8x16xf32>
    %95 = arith.addf %91, %94 : vector<8x16xf32>
    %c2_68 = arith.constant 2 : index
    %c0_69 = arith.constant 0 : index
    %c0_70 = arith.constant 0 : index
    %96 = vector.load %arg2[%c2_68, %c0_69, %c0_70] : memref<3x8x4xf32, #tpu.memory_space<vmem>>, vector<1x8x4xf32>
    %97 = vector.shape_cast %96 : vector<1x8x4xf32> to vector<8x4xf32>
    %cst_71 = arith.constant dense<0.000000e+00> : vector<8x16xf32>
    %98 = tpu.matmul %97, %88, %cst_71 {dimension_numbers = #tpu.dot_dimension_numbers<[1], [0], [0], [1], [0, 0, 1, 1], [], []>} : vector<8x4xf32>, vector<4x16xf32>, vector<8x16xf32> -> vector<8x16xf32>
    %99 = arith.addf %95, %98 : vector<8x16xf32>
    %c0_72 = arith.constant 0 : index
    %c0_73 = arith.constant 0 : index
    %100 = vector.load %arg3[%c0_72, %c0_73] : memref<8x1xf32, #tpu.memory_space<vmem>>, vector<8x1xf32>
    %101 = vector.broadcast %100 : vector<8x1xf32> to vector<8x16xf32>
    %102 = arith.addf %99, %101 : vector<8x16xf32>
    %cst_74 = arith.constant 5.000000e-01 : f32
    %103 = vector.broadcast %cst_74 : f32 to vector<8x16xf32>
    %104 = arith.mulf %103, %102 : vector<8x16xf32>
    %cst_75 = arith.constant 0.707106769 : f32
    %105 = vector.broadcast %cst_75 : f32 to vector<8x16xf32>
    %106 = arith.mulf %102, %105 : vector<8x16xf32>
    %107 = math.erf %106 : vector<8x16xf32>
    %cst_76 = arith.constant 1.000000e+00 : f32
    %108 = vector.broadcast %cst_76 : f32 to vector<8x16xf32>
    %109 = arith.addf %108, %107 : vector<8x16xf32>
    %110 = arith.mulf %104, %109 : vector<8x16xf32>
    %111 = tpu.iota {dimensions = array<i32: 1>} : vector<8x16xi32>
    %c0_i32_77 = arith.constant 0 : i32
    %112 = vector.broadcast %c0_i32_77 : i32 to vector<8x16xi32>
    %113 = arith.cmpi eq, %111, %112 : vector<8x16xi32>
    %c1_i32_78 = arith.constant 1 : i32
    %114 = tpu.dynamic_rotate %110 by %c1_i32_78 dim 1 : vector<8x16xf32>, i32 -> vector<8x16xf32>
    %cst_79 = arith.constant 0.000000e+00 : f32
    %115 = vector.broadcast %cst_79 : f32 to vector<8x16xf32>
    %116 = arith.select %113, %115, %114 : vector<8x16xi1>, vector<8x16xf32>
    %c15_i32_80 = arith.constant 15 : i32
    %117 = vector.broadcast %c15_i32_80 : i32 to vector<8x16xi32>
    %118 = arith.cmpi eq, %111, %117 : vector<8x16xi32>
    %c15_i32_81 = arith.constant 15 : i32
    %119 = tpu.dynamic_rotate %110 by %c15_i32_81 dim 1 : vector<8x16xf32>, i32 -> vector<8x16xf32>
    %cst_82 = arith.constant 0.000000e+00 : f32
    %120 = vector.broadcast %cst_82 : f32 to vector<8x16xf32>
    %121 = arith.select %118, %120, %119 : vector<8x16xi1>, vector<8x16xf32>
    %c0_83 = arith.constant 0 : index
    %c0_84 = arith.constant 0 : index
    %c0_85 = arith.constant 0 : index
    %122 = vector.load %arg4[%c0_83, %c0_84, %c0_85] : memref<3x8x8xf32, #tpu.memory_space<vmem>>, vector<1x8x8xf32>
    %123 = vector.shape_cast %122 : vector<1x8x8xf32> to vector<8x8xf32>
    %cst_86 = arith.constant dense<0.000000e+00> : vector<8x16xf32>
    %124 = tpu.matmul %123, %116, %cst_86 {dimension_numbers = #tpu.dot_dimension_numbers<[1], [0], [0], [1], [0, 0, 1, 1], [], []>} : vector<8x8xf32>, vector<8x16xf32>, vector<8x16xf32> -> vector<8x16xf32>
    %c1_87 = arith.constant 1 : index
    %c0_88 = arith.constant 0 : index
    %c0_89 = arith.constant 0 : index
    %125 = vector.load %arg4[%c1_87, %c0_88, %c0_89] : memref<3x8x8xf32, #tpu.memory_space<vmem>>, vector<1x8x8xf32>
    %126 = vector.shape_cast %125 : vector<1x8x8xf32> to vector<8x8xf32>
    %cst_90 = arith.constant dense<0.000000e+00> : vector<8x16xf32>
    %127 = tpu.matmul %126, %110, %cst_90 {dimension_numbers = #tpu.dot_dimension_numbers<[1], [0], [0], [1], [0, 0, 1, 1], [], []>} : vector<8x8xf32>, vector<8x16xf32>, vector<8x16xf32> -> vector<8x16xf32>
    %128 = arith.addf %124, %127 : vector<8x16xf32>
    %c2_91 = arith.constant 2 : index
    %c0_92 = arith.constant 0 : index
    %c0_93 = arith.constant 0 : index
    %129 = vector.load %arg4[%c2_91, %c0_92, %c0_93] : memref<3x8x8xf32, #tpu.memory_space<vmem>>, vector<1x8x8xf32>
    %130 = vector.shape_cast %129 : vector<1x8x8xf32> to vector<8x8xf32>
    %cst_94 = arith.constant dense<0.000000e+00> : vector<8x16xf32>
    %131 = tpu.matmul %130, %121, %cst_94 {dimension_numbers = #tpu.dot_dimension_numbers<[1], [0], [0], [1], [0, 0, 1, 1], [], []>} : vector<8x8xf32>, vector<8x16xf32>, vector<8x16xf32> -> vector<8x16xf32>
    %132 = arith.addf %128, %131 : vector<8x16xf32>
    %c0_95 = arith.constant 0 : index
    %c0_96 = arith.constant 0 : index
    %133 = vector.load %arg5[%c0_95, %c0_96] : memref<8x1xf32, #tpu.memory_space<vmem>>, vector<8x1xf32>
    %134 = vector.broadcast %133 : vector<8x1xf32> to vector<8x16xf32>
    %135 = arith.addf %132, %134 : vector<8x16xf32>
    %cst_97 = arith.constant 5.000000e-01 : f32
    %136 = vector.broadcast %cst_97 : f32 to vector<8x16xf32>
    %137 = arith.mulf %136, %135 : vector<8x16xf32>
    %cst_98 = arith.constant 0.707106769 : f32
    %138 = vector.broadcast %cst_98 : f32 to vector<8x16xf32>
    %139 = arith.mulf %135, %138 : vector<8x16xf32>
    %140 = math.erf %139 : vector<8x16xf32>
    %cst_99 = arith.constant 1.000000e+00 : f32
    %141 = vector.broadcast %cst_99 : f32 to vector<8x16xf32>
    %142 = arith.addf %141, %140 : vector<8x16xf32>
    %143 = arith.mulf %137, %142 : vector<8x16xf32>
    %cst_100 = arith.constant dense<0.000000e+00> : vector<8x8xf32>
    %144 = tpu.matmul %143, %0, %cst_100 {dimension_numbers = #tpu.dot_dimension_numbers<[1], [0], [0], [1], [0, 0, 1, 1], [], []>} : vector<8x16xf32>, vector<16x8xf32>, vector<8x8xf32> -> vector<8x8xf32>
    %cst_101 = arith.constant dense<0.000000e+00> : vector<8x8xf32>
    %145 = tpu.matmul %143, %1, %cst_101 {dimension_numbers = #tpu.dot_dimension_numbers<[1], [0], [0], [1], [0, 0, 1, 1], [], []>} : vector<8x16xf32>, vector<16x8xf32>, vector<8x8xf32> -> vector<8x8xf32>
    %146 = arith.maximumf %144, %145 : vector<8x8xf32>
    %c1_102 = arith.constant 1 : index
    %c0_103 = arith.constant 0 : index
    %c0_104 = arith.constant 0 : index
    %147 = vector.load %arg8[%c1_102, %c0_103, %c0_104] : memref<2x8x8xf32, #tpu.memory_space<vmem>>, vector<1x8x8xf32>
    %148 = vector.shape_cast %147 : vector<1x8x8xf32> to vector<8x8xf32>
    %149 = vector.shape_cast %146 : vector<8x8xf32> to vector<1x8x8xf32>
    tpu.vector_store %arg8[%c1_102, %c0_103, %c0_104], %149 {strides = array<i32>} : memref<2x8x8xf32, #tpu.memory_space<vmem>>, vector<1x8x8xf32>,
    return
  }
  func.func @transform_0(%arg0: i32) -> (i32, i32, i32) {
    %c0_i32 = arith.constant 0 : i32
    %c0_i32_0 = arith.constant 0 : i32
    %c0_i32_1 = arith.constant 0 : i32
    return %arg0, %c0_i32, %c0_i32_0 : i32, i32, i32
  }
  func.func @transform_1(%arg0: i32) -> (i32, i32, i32) {
    %c0_i32 = arith.constant 0 : i32
    %c0_i32_0 = arith.constant 0 : i32
    %c0_i32_1 = arith.constant 0 : i32
    %c0_i32_2 = arith.constant 0 : i32
    return %c0_i32, %c0_i32_0, %c0_i32_1 : i32, i32, i32
  }
  func.func @transform_2(%arg0: i32) -> (i32, i32) {
    %c0_i32 = arith.constant 0 : i32
    %c0_i32_0 = arith.constant 0 : i32
    %c0_i32_1 = arith.constant 0 : i32
    return %c0_i32, %c0_i32_0 : i32, i32
  }
  func.func @transform_3(%arg0: i32) -> (i32, i32, i32) {
    %c0_i32 = arith.constant 0 : i32
    %c0_i32_0 = arith.constant 0 : i32
    %c0_i32_1 = arith.constant 0 : i32
    %c0_i32_2 = arith.constant 0 : i32
    return %c0_i32, %c0_i32_0, %c0_i32_1 : i32, i32, i32
  }
  func.func @transform_4(%arg0: i32) -> (i32, i32) {
    %c0_i32 = arith.constant 0 : i32
    %c0_i32_0 = arith.constant 0 : i32
    %c0_i32_1 = arith.constant 0 : i32
    return %c0_i32, %c0_i32_0 : i32, i32
  }
  func.func @transform_5(%arg0: i32) -> (i32, i32) {
    %c0_i32 = arith.constant 0 : i32
    %c0_i32_0 = arith.constant 0 : i32
    %c0_i32_1 = arith.constant 0 : i32
    return %c0_i32, %c0_i32_0 : i32, i32
  }
  func.func @transform_6(%arg0: i32) -> (i32, i32) {
    %c0_i32 = arith.constant 0 : i32
    %c0_i32_0 = arith.constant 0 : i32
    %c0_i32_1 = arith.constant 0 : i32
    return %c0_i32, %c0_i32_0 : i32, i32
  }
  func.func @transform_7(%arg0: i32) -> (i32, i32, i32) {
    %c0_i32 = arith.constant 0 : i32
    %c0_i32_0 = arith.constant 0 : i32
    %c0_i32_1 = arith.constant 0 : i32
    return %arg0, %c0_i32, %c0_i32_0 : i32, i32, i32
  }
}

</mosaic_0001>

<llo_original>
// kernel: tpu_custom_call.1
$region0: #{tpu_custom_call.1}
  #allocation0 [shape = 'u32[]', space=smem, size = 0x4, offset = 0x4, fixed_abs, tag = 'smem constant byte address 0x4 - core index']
  #allocation1 [shape = 'u32[144,128]{1,0:T(1,128)}', space=vmem, size = 0x12000, scoped, tag = 'internal scratch']
  %s0 = inlined_call_operand.vmem [shape: f32[4,4,16], index: 0, kind: input, shape index: {}]
  %s1 = inlined_call_operand.vmem [shape: f32[3,8,4], index: 1, kind: input, shape index: {}]
  %s2 = inlined_call_operand.vmem [shape: f32[8,1], index: 2, kind: input, shape index: {}]
  %s3 = inlined_call_operand.vmem [shape: f32[3,8,8], index: 3, kind: input, shape index: {}]
  %s4 = inlined_call_operand.vmem [shape: f32[8,1], index: 4, kind: input, shape index: {}]
  %s5 = inlined_call_operand.vmem [shape: f32[16,8], index: 5, kind: input, shape index: {}]
  %s6 = inlined_call_operand.vmem [shape: f32[16,8], index: 6, kind: input, shape index: {}]
  %s7 = inlined_call_operand.hbm [shape: f32[4,8,8], index: 7, kind: output, shape index: {}]
  %s8 = sld [smem:[#allocation0]]
  $region61: #{tpu_custom_call.1} parent=0
    _
  %s10 = ssub.s32 1, %s8
  %s11 = scalar_select 0, %s10, %s8
  $region1: #{tpu_custom_call.1} parent=0
    #allocation2 [shape = 'u8[16384]{0}', space=vmem, size = 0x4000, scoped, tag = 'output window, operand 0']
    #allocation3 [shape = 's32[2]{0}', space=sflag, size = 0x8, scoped, tag = 'scoped memory for tpu_custom_call.1']
    %12 = vsyncpa [#allocation3], 0
    %s13 = scalar_lea.sflag [#allocation3], 1
    %14 = vsyncpa %s13, 0
    loop: start=0, step=1, limit=4
    $region2: #{tpu_custom_call.1} parent=1 // loop_pre_header
      _
    $region3: #{tpu_custom_call.1} parent=1 // loop_header
      %s16 = sphi 0, %s20
      %p17 = scmp.ge.s32.totalorder %s16, 4
      %s26 = sphi 0, %s28
      %s29 = sphi 0, %s26
      %s30 = sphi 0, %s29
      %s46 = sphi 0, %s30
      %s50 = sphi 0, %s50
      %s52 = sphi 0, %s50
      %s53 = sphi 0, %s52
      %s67 = sphi 0, %s53
      %s71 = sphi 0, %s71
      %s73 = sphi 0, %s71
      %s74 = sphi 0, %s73
      %s88 = sphi 0, %s74
      %s92 = sphi 0, %s92
      %s94 = sphi 0, %s92
      %s95 = sphi 0, %s94
      %s109 = sphi 0, %s95
      %s113 = sphi 0, %s113
      %s115 = sphi 0, %s113
      %s116 = sphi 0, %s115
      %s130 = sphi 0, %s116
      %s134 = sphi 0, %s134
      %s136 = sphi 0, %s134
      %s137 = sphi 0, %s136
      %s151 = sphi 0, %s137
      %s155 = sphi 0, %s155
      %s157 = sphi 0, %s155
      %s158 = sphi 0, %s157
      %s172 = sphi 0, %s158
      %s178 = sphi 0, %s180
      %s181 = sphi 0, %s178
      %s182 = sphi 0, %s181
      %s198 = sphi 0, %s182
    $region4: #{tpu_custom_call.1} parent=1 // loop_header_branch
      %19 = sbr.rel (%p17) target = $region8
    $region5: #{tpu_custom_call.1} parent=1 // loop_body
      %s21 = ssub.s32 %s16, 1
      %s22 = ssub.s32 %s16, 2
      %s23 = sadd.s32 %s16, 1
      %s24 = ssub.s32 %s16, %s23
      %p25 = scmp.eq.s32.totalorder %s24, 0
      %s27 = sadd.s32 %s26, 1
      %s28 = scalar_select %p25, %s26, %s27
      %p31 = pneg %p25
      %p32 = scmp.eq.s32.totalorder %s16, 1
      %p33 = por %p31, %p32
      %p34 = scmp.ne.s32.totalorder %s26, %s29
      %p35 = scmp.eq.s32.totalorder %s16, 0
      %p36 = por %p34, %p35
      %p37 = scmp.ne.s32.totalorder %s26, %s29
      %p38 = scmp.eq.s32.totalorder %s21, 1
      %p39 = por %p37, %p38
      %p40 = scmp.ne.s32.totalorder %s29, %s30
      %p41 = scmp.eq.s32.totalorder %s21, 0
      %p42 = por %p40, %p41
      %p43 = scmp.ne.s32.totalorder %s29, %s30
      %p44 = scmp.eq.s32.totalorder %s22, 1
      %p45 = por %p43, %p44
      %p47 = scmp.ne.s32.totalorder %s30, %s46
      %p48 = scmp.eq.s32.totalorder %s22, 0
      %p49 = por %p47, %p48
      %s51 = sadd.s32 %s50, 1
      %p54 = scmp.eq.s32.totalorder %s16, 1
      %p55 = scmp.ne.s32.totalorder %s50, %s52
      %p56 = scmp.eq.s32.totalorder %s16, 0
      %p57 = por %p55, %p56
      %p58 = scmp.ne.s32.totalorder %s50, %s52
      %p59 = scmp.eq.s32.totalorder %s21, 1
      %p60 = por %p58, %p59
      %p61 = scmp.ne.s32.totalorder %s52, %s53
      %p62 = scmp.eq.s32.totalorder %s21, 0
      %p63 = por %p61, %p62
      %p64 = scmp.ne.s32.totalorder %s52, %s53
      %p65 = scmp.eq.s32.totalorder %s22, 1
      %p66 = por %p64, %p65
      %p68 = scmp.ne.s32.totalorder %s53, %s67
      %p69 = scmp.eq.s32.totalorder %s22, 0
      %p70 = por %p68, %p69
      %s72 = sadd.s32 %s71, 1
      %p75 = scmp.eq.s32.totalorder %s16, 1
      %p76 = scmp.ne.s32.totalorder %s71, %s73
      %p77 = scmp.eq.s32.totalorder %s16, 0
      %p78 = por %p76, %p77
      %p79 = scmp.ne.s32.totalorder %s71, %s73
      %p80 = scmp.eq.s32.totalorder %s21, 1
      %p81 = por %p79, %p80
      %p82 = scmp.ne.s32.totalorder %s73, %s74
      %p83 = scmp.eq.s32.totalorder %s21, 0
      %p84 = por %p82, %p83
      %p85 = scmp.ne.s32.totalorder %s73, %s74
      %p86 = scmp.eq.s32.totalorder %s22, 1
      %p87 = por %p85, %p86
      %p89 = scmp.ne.s32.totalorder %s74, %s88
      %p90 = scmp.eq.s32.totalorder %s22, 0
      %p91 = por %p89, %p90
      %s93 = sadd.s32 %s92, 1
      %p96 = scmp.eq.s32.totalorder %s16, 1
      %p97 = scmp.ne.s32.totalorder %s92, %s94
      %p98 = scmp.eq.s32.totalorder %s16, 0
      %p99 = por %p97, %p98
      %p100 = scmp.ne.s32.totalorder %s92, %s94
      %p101 = scmp.eq.s32.totalorder %s21, 1
      %p102 = por %p100, %p101
      %p103 = scmp.ne.s32.totalorder %s94, %s95
      %p104 = scmp.eq.s32.totalorder %s21, 0
      %p105 = por %p103, %p104
      %p106 = scmp.ne.s32.totalorder %s94, %s95
      %p107 = scmp.eq.s32.totalorder %s22, 1
      %p108 = por %p106, %p107
      %p110 = scmp.ne.s32.totalorder %s95, %s109
      %p111 = scmp.eq.s32.totalorder %s22, 0
      %p112 = por %p110, %p111
      %s114 = sadd.s32 %s113, 1
      %p117 = scmp.eq.s32.totalorder %s16, 1
      %p118 = scmp.ne.s32.totalorder %s113, %s115
      %p119 = scmp.eq.s32.totalorder %s16, 0
      %p120 = por %p118, %p119
      %p121 = scmp.ne.s32.totalorder %s113, %s115
      %p122 = scmp.eq.s32.totalorder %s21, 1
      %p123 = por %p121, %p122
      %p124 = scmp.ne.s32.totalorder %s115, %s116
      %p125 = scmp.eq.s32.totalorder %s21, 0
      %p126 = por %p124, %p125
      %p127 = scmp.ne.s32.totalorder %s115, %s116
      %p128 = scmp.eq.s32.totalorder %s22, 1
      %p129 = por %p127, %p128
      %p131 = scmp.ne.s32.totalorder %s116, %s130
      %p132 = scmp.eq.s32.totalorder %s22, 0
      %p133 = por %p131, %p132
      %s135 = sadd.s32 %s134, 1
      %p138 = scmp.eq.s32.totalorder %s16, 1
      %p139 = scmp.ne.s32.totalorder %s134, %s136
      %p140 = scmp.eq.s32.totalorder %s16, 0
      %p141 = por %p139, %p140
      %p142 = scmp.ne.s32.totalorder %s134, %s136
      %p143 = scmp.eq.s32.totalorder %s21, 1
      %p144 = por %p142, %p143
      %p145 = scmp.ne.s32.totalorder %s136, %s137
      %p146 = scmp.eq.s32.totalorder %s21, 0
      %p147 = por %p145, %p146
      %p148 = scmp.ne.s32.totalorder %s136, %s137
      %p149 = scmp.eq.s32.totalorder %s22, 1
      %p150 = por %p148, %p149
      %p152 = scmp.ne.s32.totalorder %s137, %s151
      %p153 = scmp.eq.s32.totalorder %s22, 0
      %p154 = por %p152, %p153
      %s156 = sadd.s32 %s155, 1
      %p159 = scmp.eq.s32.totalorder %s16, 1
      %p160 = scmp.ne.s32.totalorder %s155, %s157
      %p161 = scmp.eq.s32.totalorder %s16, 0
      %p162 = por %p160, %p161
      %p163 = scmp.ne.s32.totalorder %s155, %s157
      %p164 = scmp.eq.s32.totalorder %s21, 1
      %p165 = por %p163, %p164
      %p166 = scmp.ne.s32.totalorder %s157, %s158
      %p167 = scmp.eq.s32.totalorder %s21, 0
      %p168 = por %p166, %p167
      %p169 = scmp.ne.s32.totalorder %s157, %s158
      %p170 = scmp.eq.s32.totalorder %s22, 1
      %p171 = por %p169, %p170
      %p173 = scmp.ne.s32.totalorder %s158, %s172
      %p174 = scmp.eq.s32.totalorder %s22, 0
      %p175 = por %p173, %p174
      %s176 = ssub.s32 %s16, %s23
      %p177 = scmp.eq.s32.totalorder %s176, 0
      %s179 = sadd.s32 %s178, 1
      %s180 = scalar_select %p177, %s178, %s179
      %p183 = pneg %p177
      %p184 = scmp.eq.s32.totalorder %s16, 1
      %p185 = por %p183, %p184
      %p186 = scmp.ne.s32.totalorder %s178, %s181
      %p187 = scmp.eq.s32.totalorder %s16, 0
      %p188 = por %p186, %p187
      %p189 = scmp.ne.s32.totalorder %s178, %s181
      %p190 = scmp.eq.s32.totalorder %s21, 1
      %p191 = por %p189, %p190
      %p192 = scmp.ne.s32.totalorder %s181, %s182
      %p193 = scmp.eq.s32.totalorder %s21, 0
      %p194 = por %p192, %p193
      %p195 = scmp.ne.s32.totalorder %s181, %s182
      %p196 = scmp.eq.s32.totalorder %s22, 1
      %p197 = por %p195, %p196
      %p199 = scmp.ne.s32.totalorder %s182, %s198
      %p200 = scmp.eq.s32.totalorder %s22, 0
      %p201 = por %p199, %p200
      %p202 = scmp.le.s32.totalorder 1, %s16
      %p203 = scmp.lt.s32.totalorder %s16, 3
      %p204 = pnand %p202, %p203
      %p205 = pneg %p204
      // Predicated region
      $region9: #{tpu_custom_call.1} parent=5 // pred_check
        _
      $region10: #{tpu_custom_call.1} parent=5 // pred_check_branch
        %207 = sbr.rel (%p204) target = $region12
      $region11: #{tpu_custom_call.1} parent=5 // pred_region
        %s208 = ssub.s32 %s16, 1
        // Predicated region
        $region13: #{tpu_custom_call.1} parent=11 // pred_check
          %p209 = pneg %p63
        $region14: #{tpu_custom_call.1} parent=11 // pred_check_branch
          %211 = sbr.rel (%p209) target = $region16
        $region15: #{tpu_custom_call.1} parent=11 // pred_region
          _
        $region16: #{tpu_custom_call.1} parent=11 // pred_fallthru
          _
        // Predicated region
        $region17: #{tpu_custom_call.1} parent=11 // pred_check
          %p212 = pneg %p84
        $region18: #{tpu_custom_call.1} parent=11 // pred_check_branch
          %214 = sbr.rel (%p212) target = $region20
        $region19: #{tpu_custom_call.1} parent=11 // pred_region
          _
        $region20: #{tpu_custom_call.1} parent=11 // pred_fallthru
          _
        // Predicated region
        $region21: #{tpu_custom_call.1} parent=11 // pred_check
          %p215 = pneg %p105
        $region22: #{tpu_custom_call.1} parent=11 // pred_check_branch
          %217 = sbr.rel (%p215) target = $region24
        $region23: #{tpu_custom_call.1} parent=11 // pred_region
          _
        $region24: #{tpu_custom_call.1} parent=11 // pred_fallthru
          _
        // Predicated region
        $region25: #{tpu_custom_call.1} parent=11 // pred_check
          %p218 = pneg %p126
        $region26: #{tpu_custom_call.1} parent=11 // pred_check_branch
          %220 = sbr.rel (%p218) target = $region28
        $region27: #{tpu_custom_call.1} parent=11 // pred_region
          _
        $region28: #{tpu_custom_call.1} parent=11 // pred_fallthru
          _
        // Predicated region
        $region29: #{tpu_custom_call.1} parent=11 // pred_check
          %p221 = pneg %p147
        $region30: #{tpu_custom_call.1} parent=11 // pred_check_branch
          %223 = sbr.rel (%p221) target = $region32
        $region31: #{tpu_custom_call.1} parent=11 // pred_region
          _
        $region32: #{tpu_custom_call.1} parent=11 // pred_fallthru
          _
        // Predicated region
        $region33: #{tpu_custom_call.1} parent=11 // pred_check
          %p224 = pneg %p168
        $region34: #{tpu_custom_call.1} parent=11 // pred_check_branch
          %226 = sbr.rel (%p224) target = $region36
        $region35: #{tpu_custom_call.1} parent=11 // pred_region
          _
        $region36: #{tpu_custom_call.1} parent=11 // pred_fallthru
          _
      $region12: #{tpu_custom_call.1} parent=5 // pred_fallthru
        _
      %p227 = scmp.lt.s32.totalorder %s16, 2
      // Predicated region
      $region37: #{tpu_custom_call.1} parent=5 // pred_check
        %p228 = pneg %p227
      $region38: #{tpu_custom_call.1} parent=5 // pred_check_branch
        %230 = sbr.rel (%p228) target = $region40
      $region39: #{tpu_custom_call.1} parent=5 // pred_region
        // Predicated region
        $region41: #{tpu_custom_call.1} parent=39 // pred_check
          %p231 = pneg %p36
        $region42: #{tpu_custom_call.1} parent=39 // pred_check_branch
          %233 = sbr.rel (%p231) target = $region44
        $region43: #{tpu_custom_call.1} parent=39 // pred_region
          %s234 = smul.u32 2, %s16
          %p235 = scmp.lt.s32.totalorder %s234, 3
          %s236 = scalar_select %p235, %s234, 3
          %s237 = smul.addr %s236, 4
          %s238 = scalar_lea.vmem %s0, %s237
          %s239 = smul.u32 2, %s16
        $region44: #{tpu_custom_call.1} parent=39 // pred_fallthru
          _
      $region40: #{tpu_custom_call.1} parent=5 // pred_fallthru
        _
      %p240 = scmp.le.s32.totalorder 1, %s16
      %p241 = scmp.lt.s32.totalorder %s16, 3
      %p242 = pnand %p240, %p241
      %p243 = pneg %p242
      // Predicated region
      $region45: #{tpu_custom_call.1} parent=5 // pred_check
        _
      $region46: #{tpu_custom_call.1} parent=5 // pred_check_branch
        %245 = sbr.rel (%p242) target = $region48
      $region47: #{tpu_custom_call.1} parent=5 // pred_region
        %s246 = ssub.s32 %s16, 1
        %s247 = smul.u32 2, %s21
        %p248 = scmp.lt.s32.totalorder %s247, 3
        %s249 = scalar_select %p248, %s247, 3
        %s250 = smul.addr %s249, 4
        %s251 = scalar_lea.vmem %s0, %s250
        %p252 = pneg %p42
        %p253 = pneg %p39
        %p254 = pneg %p63
        %p255 = pneg %p60
        %p256 = pneg %p84
        %p257 = pneg %p81
        %p258 = pneg %p105
        %p259 = pneg %p102
        %p260 = pneg %p126
        %p261 = pneg %p123
        %p262 = pneg %p147
        %p263 = pneg %p144
        %p264 = pneg %p168
        %p265 = pneg %p165
        %p266 = pneg %p194
        %p267 = pneg %p191
        %s268 = sand.u32 %s181, 1
        %s269 = scalar_lea.sflag [#allocation3], %s268
        %s270 = sand.u32 %s181, 1
        %s271 = smul.addr %s270, 16
        %s272 = scalar_lea.vmem [#allocation2], %s271
        %s273 = smul.u32 2, %s21
        %p274 = scmp.lt.s32.totalorder %s273, 3
        %s275 = scalar_select %p274, %s273, 3
        %s276 = smul.addr %s275, 4
        %s277 = scalar_lea.vmem %s0, %s276
        %s278 = smul.u32 2, %s21
        %s279 = smul.u32 2, %s21
        %v280 = vld [vmem:[%s5] sm:$0xff]
        %v281 = vld [vmem:[%s5 + $0x8] sm:$0xff]
        %v282 = vld [vmem:[%s6] sm:$0xff]
        %v283 = vld [vmem:[%s6 + $0x8] sm:$0xff]
        %v284 = vld [vmem:[%s277] sm:$0xf]
        %v285 = vlaneseq
        %v286 = vand.u32 %v285, 127
        %vm287 = vcmp.eq.s32.totalorder %v286, 0
        %vm288 = vcmask 1047680
        %289 = vrot.lane.b32.xlu0 %v284, 16
        %v290 = vpop.permute.xlu0 %289
        %v291 = vsel %vm288, %v290, %v284
        %292 = vrot.lane.b32.xlu0 %v291, 16
        %v293 = vpop.permute.xlu0 %292
        %v294 = vsel %vm288, %v293, %v284
        %296 = vrot.lane.b32.xlu0 %v294, 113
        %v297 = vpop.permute.xlu0 %296
        %v299 = vsel %vm287, 0.0, %v297
        %vm300 = vcmp.eq.s32.totalorder %v286, 15
        %301 = vrot.lane.b32.xlu0 %v294, 127
        %v302 = vpop.permute.xlu0 %301
        %v304 = vsel %vm300, 0.0, %v302
        %v305 = vld [vmem:[%s1] sm:$0xff]
        %s306 = scalar_lea.vmem %s1, 8
        %v307 = vld [vmem:[%s306] sm:$0xff]
        %vm308 = vcmask 31744
        %v310 = vsel %vm308, %v307, 0
        %vm312 = vcmask 1043456
        %v314 = vsel %vm312, %v284, 0
        %316 = vmatprep.subr.mxu0 0.0
        %317 = vmatpush1.msra.mxu0 0.0
        %318 = vmatprep.subr.mxu0 0.0
        %319 = vmatpush1.msra.mxu0 0.0
        %320 = vmatprep.subr.mxu0 0.0
        %321 = vmatpush1.msra.mxu0 0.0
        %322 = vmatprep.subr.mxu0 0.0
        %323 = vmatpush1.msra.mxu0 0.0
        %324 = vmatprep.subr.mxu0 0.0
        %325 = vmatpush1.msra.mxu0 0.0
        %326 = vmatprep.subr.mxu0 0.0
        %327 = vmatpush1.msra.mxu0 0.0
        %328 = vmatprep.subr.mxu0 0.0
        %329 = vmatpush1.msra.mxu0 0.0
        %330 = vmatprep.subr.mxu0 0.0
        %331 = vmatpush1.msra.mxu0 0.0
        %332 = vmatprep.subr.mxu0 0.0
        %333 = vmatpush1.msra.mxu0 0.0
        %334 = vmatprep.subr.mxu0 0.0
        %335 = vmatpush1.msra.mxu0 0.0
        %336 = vmatprep.subr.mxu0 0.0
        %337 = vmatpush1.msra.mxu0 0.0
        %338 = vmatprep.subr.mxu0 0.0
        %339 = vmatpush1.msra.mxu0 0.0
        %340 = vmatprep.subr.mxu0 0.0
        %341 = vmatpush1.msra.mxu0 0.0
        %342 = vmatprep.subr.mxu0 0.0
        %343 = vmatpush1.msra.mxu0 0.0
        %344 = vmatprep.subr.mxu0 0.0
        %345 = vmatpush1.msra.mxu0 0.0
        %346 = vmatprep.subr.mxu0 0.0
        %347 = vmatpush1.msra.mxu0 %v314
        %348 = vmatprep.subr.mxu0 0.0
        %349 = vmatpush2.msra.mxu0 0.0
        %350 = vmatprep.subr.mxu0 0.0
        %351 = vmatpush2.msra.mxu0 0.0
        %352 = vmatprep.subr.mxu0 0.0
        %353 = vmatpush2.msra.mxu0 0.0
        %354 = vmatprep.subr.mxu0 0.0
        %355 = vmatpush2.msra.mxu0 0.0
        %356 = vmatprep.subr.mxu0 0.0
        %357 = vmatpush2.msra.mxu0 0.0
        %358 = vmatprep.subr.mxu0 0.0
        %359 = vmatpush2.msra.mxu0 0.0
        %360 = vmatprep.subr.mxu0 0.0
        %361 = vmatpush2.msra.mxu0 0.0
        %362 = vmatprep.subr.mxu0 0.0
        %363 = vmatpush2.msra.mxu0 0.0
        %364 = vmatprep.subr.mxu0 0.0
        %365 = vmatpush2.msra.mxu0 0.0
        %366 = vmatprep.subr.mxu0 0.0
        %367 = vmatpush2.msra.mxu0 0.0
        %368 = vmatprep.subr.mxu0 0.0
        %369 = vmatpush2.msra.mxu0 0.0
        %370 = vmatprep.subr.mxu0 0.0
        %371 = vmatpush2.msra.mxu0 0.0
        %372 = vmatprep.subr.mxu0 0.0
        %373 = vmatpush2.msra.mxu0 0.0
        %374 = vmatprep.subr.mxu0 0.0
        %375 = vmatpush2.msra.mxu0 0.0
        %376 = vmatprep.subr.mxu0 0.0
        %377 = vmatpush2.msra.mxu0 0.0
        %378 = vmatprep.subr.mxu0 0.0
        %379 = vmatpush2.msra.mxu0 0.0
        %380 = vmatprep.mubr.f32.mxu0 0.0
        %381 = vmatmul.mubr.f32.gmra.mxu0 %v310
        %v382 = vpop.f32.mrf.mxu0
        %v383 = vadd.f32 0.0, %v382
        %v384 = vpop.f32.mrf.mxu0
        %385 = vdwg.mxu0
        %v387 = vsel %vm308, %v305, 0
        %v390 = vsel %vm312, %v299, 0
        %392 = vmatprep.subr.mxu0 0.0
        %393 = vmatpush1.msra.mxu0 0.0
        %394 = vmatprep.subr.mxu0 0.0
        %395 = vmatpush1.msra.mxu0 0.0
        %396 = vmatprep.subr.mxu0 0.0
        %397 = vmatpush1.msra.mxu0 0.0
        %398 = vmatprep.subr.mxu0 0.0
        %399 = vmatpush1.msra.mxu0 0.0
        %400 = vmatprep.subr.mxu0 0.0
        %401 = vmatpush1.msra.mxu0 0.0
        %402 = vmatprep.subr.mxu0 0.0
        %403 = vmatpush1.msra.mxu0 0.0
        %404 = vmatprep.subr.mxu0 0.0
        %405 = vmatpush1.msra.mxu0 0.0
        %406 = vmatprep.subr.mxu0 0.0
        %407 = vmatpush1.msra.mxu0 0.0
        %408 = vmatprep.subr.mxu0 0.0
        %409 = vmatpush1.msra.mxu0 0.0
        %410 = vmatprep.subr.mxu0 0.0
        %411 = vmatpush1.msra.mxu0 0.0
        %412 = vmatprep.subr.mxu0 0.0
        %413 = vmatpush1.msra.mxu0 0.0
        %414 = vmatprep.subr.mxu0 0.0
        %415 = vmatpush1.msra.mxu0 0.0
        %416 = vmatprep.subr.mxu0 0.0
        %417 = vmatpush1.msra.mxu0 0.0
        %418 = vmatprep.subr.mxu0 0.0
        %419 = vmatpush1.msra.mxu0 0.0
        %420 = vmatprep.subr.mxu0 0.0
        %421 = vmatpush1.msra.mxu0 0.0
        %422 = vmatprep.subr.mxu0 0.0
        %423 = vmatpush1.msra.mxu0 %v390
        %424 = vmatprep.subr.mxu0 0.0
        %425 = vmatpush2.msra.mxu0 0.0
        %426 = vmatprep.subr.mxu0 0.0
        %427 = vmatpush2.msra.mxu0 0.0
        %428 = vmatprep.subr.mxu0 0.0
        %429 = vmatpush2.msra.mxu0 0.0
        %430 = vmatprep.subr.mxu0 0.0
        %431 = vmatpush2.msra.mxu0 0.0
        %432 = vmatprep.subr.mxu0 0.0
        %433 = vmatpush2.msra.mxu0 0.0
        %434 = vmatprep.subr.mxu0 0.0
        %435 = vmatpush2.msra.mxu0 0.0
        %436 = vmatprep.subr.mxu0 0.0
        %437 = vmatpush2.msra.mxu0 0.0
        %438 = vmatprep.subr.mxu0 0.0
        %439 = vmatpush2.msra.mxu0 0.0
        %440 = vmatprep.subr.mxu0 0.0
        %441 = vmatpush2.msra.mxu0 0.0
        %442 = vmatprep.subr.mxu0 0.0
        %443 = vmatpush2.msra.mxu0 0.0
        %444 = vmatprep.subr.mxu0 0.0
        %445 = vmatpush2.msra.mxu0 0.0
        %446 = vmatprep.subr.mxu0 0.0
        %447 = vmatpush2.msra.mxu0 0.0
        %448 = vmatprep.subr.mxu0 0.0
        %449 = vmatpush2.msra.mxu0 0.0
        %450 = vmatprep.subr.mxu0 0.0
        %451 = vmatpush2.msra.mxu0 0.0
        %452 = vmatprep.subr.mxu0 0.0
        %453 = vmatpush2.msra.mxu0 0.0
        %454 = vmatprep.subr.mxu0 0.0
        %455 = vmatpush2.msra.mxu0 0.0
        %456 = vmatprep.mubr.f32.mxu0 0.0
        %457 = vmatmul.mubr.f32.gmra.mxu0 %v387
        %v458 = vpop.f32.mrf.mxu0
        %v459 = vadd.f32 %v383, %v458
        %v460 = vpop.f32.mrf.mxu0
        %461 = vdwg.mxu0
        %s462 = scalar_lea.vmem %s1, 16
        %v463 = vld [vmem:[%s462] sm:$0xff]
        %v465 = vsel %vm308, %v463, 0
        %v468 = vsel %vm312, %v304, 0
        %470 = vmatprep.subr.mxu0 0.0
        %471 = vmatpush1.msra.mxu0 0.0
        %472 = vmatprep.subr.mxu0 0.0
        %473 = vmatpush1.msra.mxu0 0.0
        %474 = vmatprep.subr.mxu0 0.0
        %475 = vmatpush1.msra.mxu0 0.0
        %476 = vmatprep.subr.mxu0 0.0
        %477 = vmatpush1.msra.mxu0 0.0
        %478 = vmatprep.subr.mxu0 0.0
        %479 = vmatpush1.msra.mxu0 0.0
        %480 = vmatprep.subr.mxu0 0.0
        %481 = vmatpush1.msra.mxu0 0.0
        %482 = vmatprep.subr.mxu0 0.0
        %483 = vmatpush1.msra.mxu0 0.0
        %484 = vmatprep.subr.mxu0 0.0
        %485 = vmatpush1.msra.mxu0 0.0
        %486 = vmatprep.subr.mxu0 0.0
        %487 = vmatpush1.msra.mxu0 0.0
        %488 = vmatprep.subr.mxu0 0.0
        %489 = vmatpush1.msra.mxu0 0.0
        %490 = vmatprep.subr.mxu0 0.0
        %491 = vmatpush1.msra.mxu0 0.0
        %492 = vmatprep.subr.mxu0 0.0
        %493 = vmatpush1.msra.mxu0 0.0
        %494 = vmatprep.subr.mxu0 0.0
        %495 = vmatpush1.msra.mxu0 0.0
        %496 = vmatprep.subr.mxu0 0.0
        %497 = vmatpush1.msra.mxu0 0.0
        %498 = vmatprep.subr.mxu0 0.0
        %499 = vmatpush1.msra.mxu0 0.0
        %500 = vmatprep.subr.mxu0 0.0
        %501 = vmatpush1.msra.mxu0 %v468
        %502 = vmatprep.subr.mxu0 0.0
        %503 = vmatpush2.msra.mxu0 0.0
        %504 = vmatprep.subr.mxu0 0.0
        %505 = vmatpush2.msra.mxu0 0.0
        %506 = vmatprep.subr.mxu0 0.0
        %507 = vmatpush2.msra.mxu0 0.0
        %508 = vmatprep.subr.mxu0 0.0
        %509 = vmatpush2.msra.mxu0 0.0
        %510 = vmatprep.subr.mxu0 0.0
        %511 = vmatpush2.msra.mxu0 0.0
        %512 = vmatprep.subr.mxu0 0.0
        %513 = vmatpush2.msra.mxu0 0.0
        %514 = vmatprep.subr.mxu0 0.0
        %515 = vmatpush2.msra.mxu0 0.0
        %516 = vmatprep.subr.mxu0 0.0
        %517 = vmatpush2.msra.mxu0 0.0
        %518 = vmatprep.subr.mxu0 0.0
        %519 = vmatpush2.msra.mxu0 0.0
        %520 = vmatprep.subr.mxu0 0.0
        %521 = vmatpush2.msra.mxu0 0.0
        %522 = vmatprep.subr.mxu0 0.0
        %523 = vmatpush2.msra.mxu0 0.0
        %524 = vmatprep.subr.mxu0 0.0
        %525 = vmatpush2.msra.mxu0 0.0
        %526 = vmatprep.subr.mxu0 0.0
        %527 = vmatpush2.msra.mxu0 0.0
        %528 = vmatprep.subr.mxu0 0.0
        %529 = vmatpush2.msra.mxu0 0.0
        %530 = vmatprep.subr.mxu0 0.0
        %531 = vmatpush2.msra.mxu0 0.0
        %532 = vmatprep.subr.mxu0 0.0
        %533 = vmatpush2.msra.mxu0 0.0
        %534 = vmatprep.mubr.f32.mxu0 0.0
        %535 = vmatmul.mubr.f32.gmra.mxu0 %v465
        %v536 = vpop.f32.mrf.mxu0
        %v537 = vadd.f32 0.0, %v536
        %v538 = vpop.f32.mrf.mxu0
        %539 = vdwg.mxu0
        %v540 = vadd.f32 %v459, %v537
        %v541 = vld [vmem:[%s2] sm:$0xff]
        %543 = vset.pattern.permute.xlu0 0
        %544 = vperm.xlu0 %543, %v541
        %v545 = vpop.permute.xlu0 %544
        %v547 = vadd.f32 %v540, %v545
        %v548 = vmul.f32 %v547, 0.5
        %v549 = vmul.f32 %v547, 0.70710677
        %v550 = verf.f32.pop %v549
        %v551 = vadd.f32 %v550, 1.0
        %v552 = vmul.f32 %v548, %v551
        %553 = vrot.lane.b32.xlu0 %v552, 16
        %v554 = vpop.permute.xlu0 %553
        %v555 = vsel %vm288, %v554, %v552
        %556 = vrot.lane.b32.xlu0 %v555, 16
        %v557 = vpop.permute.xlu0 %556
        %v558 = vsel %vm288, %v557, %v552
        %560 = vrot.lane.b32.xlu0 %v558, 113
        %v561 = vpop.permute.xlu0 %560
        %v563 = vsel %vm287, 0.0, %v561
        %564 = vrot.lane.b32.xlu0 %v558, 127
        %v565 = vpop.permute.xlu0 %564
        %v567 = vsel %vm300, 0.0, %v565
        %v568 = vld [vmem:[%s3] sm:$0xff]
        %s569 = scalar_lea.vmem %s3, 8
        %v570 = vld [vmem:[%s569] sm:$0xff]
        %vm571 = vcmask 64512
        %v573 = vsel %vm571, %v570, 0
        %575 = vmatprep.subr.mxu0 0.0
        %576 = vmatpush1.msra.mxu0 0.0
        %577 = vmatprep.subr.mxu0 0.0
        %578 = vmatpush1.msra.mxu0 0.0
        %579 = vmatprep.subr.mxu0 0.0
        %580 = vmatpush1.msra.mxu0 0.0
        %581 = vmatprep.subr.mxu0 0.0
        %582 = vmatpush1.msra.mxu0 0.0
        %583 = vmatprep.subr.mxu0 0.0
        %584 = vmatpush1.msra.mxu0 0.0
        %585 = vmatprep.subr.mxu0 0.0
        %586 = vmatpush1.msra.mxu0 0.0
        %587 = vmatprep.subr.mxu0 0.0
        %588 = vmatpush1.msra.mxu0 0.0
        %589 = vmatprep.subr.mxu0 0.0
        %590 = vmatpush1.msra.mxu0 0.0
        %591 = vmatprep.subr.mxu0 0.0
        %592 = vmatpush1.msra.mxu0 0.0
        %593 = vmatprep.subr.mxu0 0.0
        %594 = vmatpush1.msra.mxu0 0.0
        %595 = vmatprep.subr.mxu0 0.0
        %596 = vmatpush1.msra.mxu0 0.0
        %597 = vmatprep.subr.mxu0 0.0
        %598 = vmatpush1.msra.mxu0 0.0
        %599 = vmatprep.subr.mxu0 0.0
        %600 = vmatpush1.msra.mxu0 0.0
        %601 = vmatprep.subr.mxu0 0.0
        %602 = vmatpush1.msra.mxu0 0.0
        %603 = vmatprep.subr.mxu0 0.0
        %604 = vmatpush1.msra.mxu0 0.0
        %605 = vmatprep.subr.mxu0 0.0
        %606 = vmatpush1.msra.mxu0 %v552
        %607 = vmatprep.subr.mxu0 0.0
        %608 = vmatpush2.msra.mxu0 0.0
        %609 = vmatprep.subr.mxu0 0.0
        %610 = vmatpush2.msra.mxu0 0.0
        %611 = vmatprep.subr.mxu0 0.0
        %612 = vmatpush2.msra.mxu0 0.0
        %613 = vmatprep.subr.mxu0 0.0
        %614 = vmatpush2.msra.mxu0 0.0
        %615 = vmatprep.subr.mxu0 0.0
        %616 = vmatpush2.msra.mxu0 0.0
        %617 = vmatprep.subr.mxu0 0.0
        %618 = vmatpush2.msra.mxu0 0.0
        %619 = vmatprep.subr.mxu0 0.0
        %620 = vmatpush2.msra.mxu0 0.0
        %621 = vmatprep.subr.mxu0 0.0
        %622 = vmatpush2.msra.mxu0 0.0
        %623 = vmatprep.subr.mxu0 0.0
        %624 = vmatpush2.msra.mxu0 0.0
        %625 = vmatprep.subr.mxu0 0.0
        %626 = vmatpush2.msra.mxu0 0.0
        %627 = vmatprep.subr.mxu0 0.0
        %628 = vmatpush2.msra.mxu0 0.0
        %629 = vmatprep.subr.mxu0 0.0
        %630 = vmatpush2.msra.mxu0 0.0
        %631 = vmatprep.subr.mxu0 0.0
        %632 = vmatpush2.msra.mxu0 0.0
        %633 = vmatprep.subr.mxu0 0.0
        %634 = vmatpush2.msra.mxu0 0.0
        %635 = vmatprep.subr.mxu0 0.0
        %636 = vmatpush2.msra.mxu0 0.0
        %637 = vmatprep.subr.mxu0 0.0
        %638 = vmatpush2.msra.mxu0 0.0
        %639 = vmatprep.mubr.f32.mxu0 0.0
        %640 = vmatmul.mubr.f32.gmra.mxu0 %v573
        %v641 = vpop.f32.mrf.mxu0
        %v642 = vadd.f32 0.0, %v641
        %v643 = vpop.f32.mrf.mxu0
        %644 = vdwg.mxu0
        %v646 = vsel %vm571, %v568, 0
        %648 = vmatprep.subr.mxu0 0.0
        %649 = vmatpush1.msra.mxu0 0.0
        %650 = vmatprep.subr.mxu0 0.0
        %651 = vmatpush1.msra.mxu0 0.0
        %652 = vmatprep.subr.mxu0 0.0
        %653 = vmatpush1.msra.mxu0 0.0
        %654 = vmatprep.subr.mxu0 0.0
        %655 = vmatpush1.msra.mxu0 0.0
        %656 = vmatprep.subr.mxu0 0.0
        %657 = vmatpush1.msra.mxu0 0.0
        %658 = vmatprep.subr.mxu0 0.0
        %659 = vmatpush1.msra.mxu0 0.0
        %660 = vmatprep.subr.mxu0 0.0
        %661 = vmatpush1.msra.mxu0 0.0
        %662 = vmatprep.subr.mxu0 0.0
        %663 = vmatpush1.msra.mxu0 0.0
        %664 = vmatprep.subr.mxu0 0.0
        %665 = vmatpush1.msra.mxu0 0.0
        %666 = vmatprep.subr.mxu0 0.0
        %667 = vmatpush1.msra.mxu0 0.0
        %668 = vmatprep.subr.mxu0 0.0
        %669 = vmatpush1.msra.mxu0 0.0
        %670 = vmatprep.subr.mxu0 0.0
        %671 = vmatpush1.msra.mxu0 0.0
        %672 = vmatprep.subr.mxu0 0.0
        %673 = vmatpush1.msra.mxu0 0.0
        %674 = vmatprep.subr.mxu0 0.0
        %675 = vmatpush1.msra.mxu0 0.0
        %676 = vmatprep.subr.mxu0 0.0
        %677 = vmatpush1.msra.mxu0 0.0
        %678 = vmatprep.subr.mxu0 0.0
        %679 = vmatpush1.msra.mxu0 %v563
        %680 = vmatprep.subr.mxu0 0.0
        %681 = vmatpush2.msra.mxu0 0.0
        %682 = vmatprep.subr.mxu0 0.0
        %683 = vmatpush2.msra.mxu0 0.0
        %684 = vmatprep.subr.mxu0 0.0
        %685 = vmatpush2.msra.mxu0 0.0
        %686 = vmatprep.subr.mxu0 0.0
        %687 = vmatpush2.msra.mxu0 0.0
        %688 = vmatprep.subr.mxu0 0.0
        %689 = vmatpush2.msra.mxu0 0.0
        %690 = vmatprep.subr.mxu0 0.0
        %691 = vmatpush2.msra.mxu0 0.0
        %692 = vmatprep.subr.mxu0 0.0
        %693 = vmatpush2.msra.mxu0 0.0
        %694 = vmatprep.subr.mxu0 0.0
        %695 = vmatpush2.msra.mxu0 0.0
        %696 = vmatprep.subr.mxu0 0.0
        %697 = vmatpush2.msra.mxu0 0.0
        %698 = vmatprep.subr.mxu0 0.0
        %699 = vmatpush2.msra.mxu0 0.0
        %700 = vmatprep.subr.mxu0 0.0
        %701 = vmatpush2.msra.mxu0 0.0
        %702 = vmatprep.subr.mxu0 0.0
        %703 = vmatpush2.msra.mxu0 0.0
        %704 = vmatprep.subr.mxu0 0.0
        %705 = vmatpush2.msra.mxu0 0.0
        %706 = vmatprep.subr.mxu0 0.0
        %707 = vmatpush2.msra.mxu0 0.0
        %708 = vmatprep.subr.mxu0 0.0
        %709 = vmatpush2.msra.mxu0 0.0
        %710 = vmatprep.subr.mxu0 0.0
        %711 = vmatpush2.msra.mxu0 0.0
        %712 = vmatprep.mubr.f32.mxu0 0.0
        %713 = vmatmul.mubr.f32.gmra.mxu0 %v646
        %v714 = vpop.f32.mrf.mxu0
        %v715 = vadd.f32 %v642, %v714
        %v716 = vpop.f32.mrf.mxu0
        %717 = vdwg.mxu0
        %s718 = scalar_lea.vmem %s3, 16
        %v719 = vld [vmem:[%s718] sm:$0xff]
        %v721 = vsel %vm571, %v719, 0
        %723 = vmatprep.subr.mxu0 0.0
        %724 = vmatpush1.msra.mxu0 0.0
        %725 = vmatprep.subr.mxu0 0.0
        %726 = vmatpush1.msra.mxu0 0.0
        %727 = vmatprep.subr.mxu0 0.0
        %728 = vmatpush1.msra.mxu0 0.0
        %729 = vmatprep.subr.mxu0 0.0
        %730 = vmatpush1.msra.mxu0 0.0
        %731 = vmatprep.subr.mxu0 0.0
        %732 = vmatpush1.msra.mxu0 0.0
        %733 = vmatprep.subr.mxu0 0.0
        %734 = vmatpush1.msra.mxu0 0.0
        %735 = vmatprep.subr.mxu0 0.0
        %736 = vmatpush1.msra.mxu0 0.0
        %737 = vmatprep.subr.mxu0 0.0
        %738 = vmatpush1.msra.mxu0 0.0
        %739 = vmatprep.subr.mxu0 0.0
        %740 = vmatpush1.msra.mxu0 0.0
        %741 = vmatprep.subr.mxu0 0.0
        %742 = vmatpush1.msra.mxu0 0.0
        %743 = vmatprep.subr.mxu0 0.0
        %744 = vmatpush1.msra.mxu0 0.0
        %745 = vmatprep.subr.mxu0 0.0
        %746 = vmatpush1.msra.mxu0 0.0
        %747 = vmatprep.subr.mxu0 0.0
        %748 = vmatpush1.msra.mxu0 0.0
        %749 = vmatprep.subr.mxu0 0.0
        %750 = vmatpush1.msra.mxu0 0.0
        %751 = vmatprep.subr.mxu0 0.0
        %752 = vmatpush1.msra.mxu0 0.0
        %753 = vmatprep.subr.mxu0 0.0
        %754 = vmatpush1.msra.mxu0 %v567
        %755 = vmatprep.subr.mxu0 0.0
        %756 = vmatpush2.msra.mxu0 0.0
        %757 = vmatprep.subr.mxu0 0.0
        %758 = vmatpush2.msra.mxu0 0.0
        %759 = vmatprep.subr.mxu0 0.0
        %760 = vmatpush2.msra.mxu0 0.0
        %761 = vmatprep.subr.mxu0 0.0
        %762 = vmatpush2.msra.mxu0 0.0
        %763 = vmatprep.subr.mxu0 0.0
        %764 = vmatpush2.msra.mxu0 0.0
        %765 = vmatprep.subr.mxu0 0.0
        %766 = vmatpush2.msra.mxu0 0.0
        %767 = vmatprep.subr.mxu0 0.0
        %768 = vmatpush2.msra.mxu0 0.0
        %769 = vmatprep.subr.mxu0 0.0
        %770 = vmatpush2.msra.mxu0 0.0
        %771 = vmatprep.subr.mxu0 0.0
        %772 = vmatpush2.msra.mxu0 0.0
        %773 = vmatprep.subr.mxu0 0.0
        %774 = vmatpush2.msra.mxu0 0.0
        %775 = vmatprep.subr.mxu0 0.0
        %776 = vmatpush2.msra.mxu0 0.0
        %777 = vmatprep.subr.mxu0 0.0
        %778 = vmatpush2.msra.mxu0 0.0
        %779 = vmatprep.subr.mxu0 0.0
        %780 = vmatpush2.msra.mxu0 0.0
        %781 = vmatprep.subr.mxu0 0.0
        %782 = vmatpush2.msra.mxu0 0.0
        %783 = vmatprep.subr.mxu0 0.0
        %784 = vmatpush2.msra.mxu0 0.0
        %785 = vmatprep.subr.mxu0 0.0
        %786 = vmatpush2.msra.mxu0 0.0
        %787 = vmatprep.mubr.f32.mxu0 0.0
        %788 = vmatmul.mubr.f32.gmra.mxu0 %v721
        %v789 = vpop.f32.mrf.mxu0
        %v790 = vadd.f32 0.0, %v789
        %v791 = vpop.f32.mrf.mxu0
        %792 = vdwg.mxu0
        %v793 = vadd.f32 %v715, %v790
        %v794 = vld [vmem:[%s4] sm:$0xff]
        %796 = vset.pattern.permute.xlu0 0
        %797 = vperm.xlu0 %796, %v794
        %v798 = vpop.permute.xlu0 %797
        %v800 = vadd.f32 %v793, %v798
        %v801 = vmul.f32 %v800, 0.5
        %v802 = vmul.f32 %v800, 0.70710677
        %v803 = verf.f32.pop %v802
        %v804 = vadd.f32 %v803, 1.0
        %v805 = vmul.f32 %v801, %v804
        %vm806 = vcmask 130048
        %v808 = vsel %vm806, %v805, 0
        %810 = vmatprep.subr.mxu0 0.0
        %811 = vmatpush1.msra.mxu0 0.0
        %812 = vmatprep.subr.mxu0 0.0
        %813 = vmatpush1.msra.mxu0 0.0
        %814 = vmatprep.subr.mxu0 0.0
        %815 = vmatpush1.msra.mxu0 0.0
        %816 = vmatprep.subr.mxu0 0.0
        %817 = vmatpush1.msra.mxu0 0.0
        %818 = vmatprep.subr.mxu0 0.0
        %819 = vmatpush1.msra.mxu0 0.0
        %820 = vmatprep.subr.mxu0 0.0
        %821 = vmatpush1.msra.mxu0 0.0
        %822 = vmatprep.subr.mxu0 0.0
        %823 = vmatpush1.msra.mxu0 0.0
        %824 = vmatprep.subr.mxu0 0.0
        %825 = vmatpush1.msra.mxu0 0.0
        %826 = vmatprep.subr.mxu0 0.0
        %827 = vmatpush1.msra.mxu0 0.0
        %828 = vmatprep.subr.mxu0 0.0
        %829 = vmatpush1.msra.mxu0 0.0
        %830 = vmatprep.subr.mxu0 0.0
        %831 = vmatpush1.msra.mxu0 0.0
        %832 = vmatprep.subr.mxu0 0.0
        %833 = vmatpush1.msra.mxu0 0.0
        %834 = vmatprep.subr.mxu0 0.0
        %835 = vmatpush1.msra.mxu0 0.0
        %836 = vmatprep.subr.mxu0 0.0
        %837 = vmatpush1.msra.mxu0 0.0
        %838 = vmatprep.subr.mxu0 0.0
        %839 = vmatpush1.msra.mxu0 %v281
        %840 = vmatprep.subr.mxu0 0.0
        %841 = vmatpush1.msra.mxu0 %v280
        %842 = vmatprep.subr.mxu0 0.0
        %843 = vmatpush2.msra.mxu0 0.0
        %844 = vmatprep.subr.mxu0 0.0
        %845 = vmatpush2.msra.mxu0 0.0
        %846 = vmatprep.subr.mxu0 0.0
        %847 = vmatpush2.msra.mxu0 0.0
        %848 = vmatprep.subr.mxu0 0.0
        %849 = vmatpush2.msra.mxu0 0.0
        %850 = vmatprep.subr.mxu0 0.0
        %851 = vmatpush2.msra.mxu0 0.0
        %852 = vmatprep.subr.mxu0 0.0
        %853 = vmatpush2.msra.mxu0 0.0
        %854 = vmatprep.subr.mxu0 0.0
        %855 = vmatpush2.msra.mxu0 0.0
        %856 = vmatprep.subr.mxu0 0.0
        %857 = vmatpush2.msra.mxu0 0.0
        %858 = vmatprep.subr.mxu0 0.0
        %859 = vmatpush2.msra.mxu0 0.0
        %860 = vmatprep.subr.mxu0 0.0
        %861 = vmatpush2.msra.mxu0 0.0
        %862 = vmatprep.subr.mxu0 0.0
        %863 = vmatpush2.msra.mxu0 0.0
        %864 = vmatprep.subr.mxu0 0.0
        %865 = vmatpush2.msra.mxu0 0.0
        %866 = vmatprep.subr.mxu0 0.0
        %867 = vmatpush2.msra.mxu0 0.0
        %868 = vmatprep.subr.mxu0 0.0
        %869 = vmatpush2.msra.mxu0 0.0
        %870 = vmatprep.subr.mxu0 0.0
        %871 = vmatpush2.msra.mxu0 0.0
        %872 = vmatprep.subr.mxu0 0.0
        %873 = vmatpush2.msra.mxu0 0.0
        %874 = vmatprep.mubr.f32.mxu0 0.0
        %875 = vmatmul.mubr.f32.gmra.mxu0 %v808
        %v876 = vpop.f32.mrf.mxu0
        %v877 = vadd.f32 0.0, %v876
        %v878 = vpop.f32.mrf.mxu0
        %879 = vdwg.mxu0
        %880 = vmatprep.subr.mxu0 0.0
        %881 = vmatpush1.msra.mxu0 0.0
        %882 = vmatprep.subr.mxu0 0.0
        %883 = vmatpush1.msra.mxu0 0.0
        %884 = vmatprep.subr.mxu0 0.0
        %885 = vmatpush1.msra.mxu0 0.0
        %886 = vmatprep.subr.mxu0 0.0
        %887 = vmatpush1.msra.mxu0 0.0
        %888 = vmatprep.subr.mxu0 0.0
        %889 = vmatpush1.msra.mxu0 0.0
        %890 = vmatprep.subr.mxu0 0.0
        %891 = vmatpush1.msra.mxu0 0.0
        %892 = vmatprep.subr.mxu0 0.0
        %893 = vmatpush1.msra.mxu0 0.0
        %894 = vmatprep.subr.mxu0 0.0
        %895 = vmatpush1.msra.mxu0 0.0
        %896 = vmatprep.subr.mxu0 0.0
        %897 = vmatpush1.msra.mxu0 0.0
        %898 = vmatprep.subr.mxu0 0.0
        %899 = vmatpush1.msra.mxu0 0.0
        %900 = vmatprep.subr.mxu0 0.0
        %901 = vmatpush1.msra.mxu0 0.0
        %902 = vmatprep.subr.mxu0 0.0
        %903 = vmatpush1.msra.mxu0 0.0
        %904 = vmatprep.subr.mxu0 0.0
        %905 = vmatpush1.msra.mxu0 0.0
        %906 = vmatprep.subr.mxu0 0.0
        %907 = vmatpush1.msra.mxu0 0.0
        %908 = vmatprep.subr.mxu0 0.0
        %909 = vmatpush1.msra.mxu0 %v283
        %910 = vmatprep.subr.mxu0 0.0
        %911 = vmatpush1.msra.mxu0 %v282
        %912 = vmatprep.subr.mxu0 0.0
        %913 = vmatpush2.msra.mxu0 0.0
        %914 = vmatprep.subr.mxu0 0.0
        %915 = vmatpush2.msra.mxu0 0.0
        %916 = vmatprep.subr.mxu0 0.0
        %917 = vmatpush2.msra.mxu0 0.0
        %918 = vmatprep.subr.mxu0 0.0
        %919 = vmatpush2.msra.mxu0 0.0
        %920 = vmatprep.subr.mxu0 0.0
        %921 = vmatpush2.msra.mxu0 0.0
        %922 = vmatprep.subr.mxu0 0.0
        %923 = vmatpush2.msra.mxu0 0.0
        %924 = vmatprep.subr.mxu0 0.0
        %925 = vmatpush2.msra.mxu0 0.0
        %926 = vmatprep.subr.mxu0 0.0
        %927 = vmatpush2.msra.mxu0 0.0
        %928 = vmatprep.subr.mxu0 0.0
        %929 = vmatpush2.msra.mxu0 0.0
        %930 = vmatprep.subr.mxu0 0.0
        %931 = vmatpush2.msra.mxu0 0.0
        %932 = vmatprep.subr.mxu0 0.0
        %933 = vmatpush2.msra.mxu0 0.0
        %934 = vmatprep.subr.mxu0 0.0
        %935 = vmatpush2.msra.mxu0 0.0
        %936 = vmatprep.subr.mxu0 0.0
        %937 = vmatpush2.msra.mxu0 0.0
        %938 = vmatprep.subr.mxu0 0.0
        %939 = vmatpush2.msra.mxu0 0.0
        %940 = vmatprep.subr.mxu0 0.0
        %941 = vmatpush2.msra.mxu0 0.0
        %942 = vmatprep.subr.mxu0 0.0
        %943 = vmatpush2.msra.mxu0 0.0
        %944 = vmatprep.mubr.f32.mxu0 0.0
        %945 = vmatmul.mubr.f32.gmra.mxu0 %v808
        %v946 = vpop.f32.mrf.mxu0
        %v947 = vadd.f32 0.0, %v946
        %v948 = vpop.f32.mrf.mxu0
        %949 = vdwg.mxu0
        %v950 = vmax.f32 %v877, %v947
        %951 = vst.msk [vmem:[%s272] sm:$0xff] %vm571, %v950
        %s952 = scalar_lea.vmem %s277, 4
        %v953 = vld [vmem:[%s952] sm:$0xf]
        %954 = vrot.lane.b32.xlu0 %v953, 16
        %v955 = vpop.permute.xlu0 %954
        %v956 = vsel %vm288, %v955, %v953
        %957 = vrot.lane.b32.xlu0 %v956, 16
        %v958 = vpop.permute.xlu0 %957
        %v959 = vsel %vm288, %v958, %v953
        %961 = vrot.lane.b32.xlu0 %v959, 113
        %v962 = vpop.permute.xlu0 %961
        %v964 = vsel %vm287, 0.0, %v962
        %965 = vrot.lane.b32.xlu0 %v959, 127
        %v966 = vpop.permute.xlu0 %965
        %v968 = vsel %vm300, 0.0, %v966
        %v969 = vld [vmem:[%s1] sm:$0xff]
        %v970 = vld [vmem:[%s306] sm:$0xff]
        %v972 = vsel %vm308, %v970, 0
        %v975 = vsel %vm312, %v953, 0
        %977 = vmatprep.subr.mxu0 0.0
        %978 = vmatpush1.msra.mxu0 0.0
        %979 = vmatprep.subr.mxu0 0.0
        %980 = vmatpush1.msra.mxu0 0.0
        %981 = vmatprep.subr.mxu0 0.0
        %982 = vmatpush1.msra.mxu0 0.0
        %983 = vmatprep.subr.mxu0 0.0
        %984 = vmatpush1.msra.mxu0 0.0
        %985 = vmatprep.subr.mxu0 0.0
        %986 = vmatpush1.msra.mxu0 0.0
        %987 = vmatprep.subr.mxu0 0.0
        %988 = vmatpush1.msra.mxu0 0.0
        %989 = vmatprep.subr.mxu0 0.0
        %990 = vmatpush1.msra.mxu0 0.0
        %991 = vmatprep.subr.mxu0 0.0
        %992 = vmatpush1.msra.mxu0 0.0
        %993 = vmatprep.subr.mxu0 0.0
        %994 = vmatpush1.msra.mxu0 0.0
        %995 = vmatprep.subr.mxu0 0.0
        %996 = vmatpush1.msra.mxu0 0.0
        %997 = vmatprep.subr.mxu0 0.0
        %998 = vmatpush1.msra.mxu0 0.0
        %999 = vmatprep.subr.mxu0 0.0
        %1000 = vmatpush1.msra.mxu0 0.0
        %1001 = vmatprep.subr.mxu0 0.0
        %1002 = vmatpush1.msra.mxu0 0.0
        %1003 = vmatprep.subr.mxu0 0.0
        %1004 = vmatpush1.msra.mxu0 0.0
        %1005 = vmatprep.subr.mxu0 0.0
        %1006 = vmatpush1.msra.mxu0 0.0
        %1007 = vmatprep.subr.mxu0 0.0
        %1008 = vmatpush1.msra.mxu0 %v975
        %1009 = vmatprep.subr.mxu0 0.0
        %1010 = vmatpush2.msra.mxu0 0.0
        %1011 = vmatprep.subr.mxu0 0.0
        %1012 = vmatpush2.msra.mxu0 0.0
        %1013 = vmatprep.subr.mxu0 0.0
        %1014 = vmatpush2.msra.mxu0 0.0
        %1015 = vmatprep.subr.mxu0 0.0
        %1016 = vmatpush2.msra.mxu0 0.0
        %1017 = vmatprep.subr.mxu0 0.0
        %1018 = vmatpush2.msra.mxu0 0.0
        %1019 = vmatprep.subr.mxu0 0.0
        %1020 = vmatpush2.msra.mxu0 0.0
        %1021 = vmatprep.subr.mxu0 0.0
        %1022 = vmatpush2.msra.mxu0 0.0
        %1023 = vmatprep.subr.mxu0 0.0
        %1024 = vmatpush2.msra.mxu0 0.0
        %1025 = vmatprep.subr.mxu0 0.0
        %1026 = vmatpush2.msra.mxu0 0.0
        %1027 = vmatprep.subr.mxu0 0.0
        %1028 = vmatpush2.msra.mxu0 0.0
        %1029 = vmatprep.subr.mxu0 0.0
        %1030 = vmatpush2.msra.mxu0 0.0
        %1031 = vmatprep.subr.mxu0 0.0
        %1032 = vmatpush2.msra.mxu0 0.0
        %1033 = vmatprep.subr.mxu0 0.0
        %1034 = vmatpush2.msra.mxu0 0.0
        %1035 = vmatprep.subr.mxu0 0.0
        %1036 = vmatpush2.msra.mxu0 0.0
        %1037 = vmatprep.subr.mxu0 0.0
        %1038 = vmatpush2.msra.mxu0 0.0
        %1039 = vmatprep.subr.mxu0 0.0
        %1040 = vmatpush2.msra.mxu0 0.0
        %1041 = vmatprep.mubr.f32.mxu0 0.0
        %1042 = vmatmul.mubr.f32.gmra.mxu0 %v972
        %v1043 = vpop.f32.mrf.mxu0
        %v1044 = vadd.f32 0.0, %v1043
        %v1045 = vpop.f32.mrf.mxu0
        %1046 = vdwg.mxu0
        %v1048 = vsel %vm308, %v969, 0
        %v1051 = vsel %vm312, %v964, 0
        %1053 = vmatprep.subr.mxu0 0.0
        %1054 = vmatpush1.msra.mxu0 0.0
        %1055 = vmatprep.subr.mxu0 0.0
        %1056 = vmatpush1.msra.mxu0 0.0
        %1057 = vmatprep.subr.mxu0 0.0
        %1058 = vmatpush1.msra.mxu0 0.0
        %1059 = vmatprep.subr.mxu0 0.0
        %1060 = vmatpush1.msra.mxu0 0.0
        %1061 = vmatprep.subr.mxu0 0.0
        %1062 = vmatpush1.msra.mxu0 0.0
        %1063 = vmatprep.subr.mxu0 0.0
        %1064 = vmatpush1.msra.mxu0 0.0
        %1065 = vmatprep.subr.mxu0 0.0
        %1066 = vmatpush1.msra.mxu0 0.0
        %1067 = vmatprep.subr.mxu0 0.0
        %1068 = vmatpush1.msra.mxu0 0.0
        %1069 = vmatprep.subr.mxu0 0.0
        %1070 = vmatpush1.msra.mxu0 0.0
        %1071 = vmatprep.subr.mxu0 0.0
        %1072 = vmatpush1.msra.mxu0 0.0
        %1073 = vmatprep.subr.mxu0 0.0
        %1074 = vmatpush1.msra.mxu0 0.0
        %1075 = vmatprep.subr.mxu0 0.0
        %1076 = vmatpush1.msra.mxu0 0.0
        %1077 = vmatprep.subr.mxu0 0.0
        %1078 = vmatpush1.msra.mxu0 0.0
        %1079 = vmatprep.subr.mxu0 0.0
        %1080 = vmatpush1.msra.mxu0 0.0
        %1081 = vmatprep.subr.mxu0 0.0
        %1082 = vmatpush1.msra.mxu0 0.0
        %1083 = vmatprep.subr.mxu0 0.0
        %1084 = vmatpush1.msra.mxu0 %v1051
        %1085 = vmatprep.subr.mxu0 0.0
        %1086 = vmatpush2.msra.mxu0 0.0
        %1087 = vmatprep.subr.mxu0 0.0
        %1088 = vmatpush2.msra.mxu0 0.0
        %1089 = vmatprep.subr.mxu0 0.0
        %1090 = vmatpush2.msra.mxu0 0.0
        %1091 = vmatprep.subr.mxu0 0.0
        %1092 = vmatpush2.msra.mxu0 0.0
        %1093 = vmatprep.subr.mxu0 0.0
        %1094 = vmatpush2.msra.mxu0 0.0
        %1095 = vmatprep.subr.mxu0 0.0
        %1096 = vmatpush2.msra.mxu0 0.0
        %1097 = vmatprep.subr.mxu0 0.0
        %1098 = vmatpush2.msra.mxu0 0.0
        %1099 = vmatprep.subr.mxu0 0.0
        %1100 = vmatpush2.msra.mxu0 0.0
        %1101 = vmatprep.subr.mxu0 0.0
        %1102 = vmatpush2.msra.mxu0 0.0
        %1103 = vmatprep.subr.mxu0 0.0
        %1104 = vmatpush2.msra.mxu0 0.0
        %1105 = vmatprep.subr.mxu0 0.0
        %1106 = vmatpush2.msra.mxu0 0.0
        %1107 = vmatprep.subr.mxu0 0.0
        %1108 = vmatpush2.msra.mxu0 0.0
        %1109 = vmatprep.subr.mxu0 0.0
        %1110 = vmatpush2.msra.mxu0 0.0
        %1111 = vmatprep.subr.mxu0 0.0
        %1112 = vmatpush2.msra.mxu0 0.0
        %1113 = vmatprep.subr.mxu0 0.0
        %1114 = vmatpush2.msra.mxu0 0.0
        %1115 = vmatprep.subr.mxu0 0.0
        %1116 = vmatpush2.msra.mxu0 0.0
        %1117 = vmatprep.mubr.f32.mxu0 0.0
        %1118 = vmatmul.mubr.f32.gmra.mxu0 %v1048
        %v1119 = vpop.f32.mrf.mxu0
        %v1120 = vadd.f32 %v1044, %v1119
        %v1121 = vpop.f32.mrf.mxu0
        %1122 = vdwg.mxu0
        %v1123 = vld [vmem:[%s462] sm:$0xff]
        %v1125 = vsel %vm308, %v1123, 0
        %v1128 = vsel %vm312, %v968, 0
        %1130 = vmatprep.subr.mxu0 0.0
        %1131 = vmatpush1.msra.mxu0 0.0
        %1132 = vmatprep.subr.mxu0 0.0
        %1133 = vmatpush1.msra.mxu0 0.0
        %1134 = vmatprep.subr.mxu0 0.0
        %1135 = vmatpush1.msra.mxu0 0.0
        %1136 = vmatprep.subr.mxu0 0.0
        %1137 = vmatpush1.msra.mxu0 0.0
        %1138 = vmatprep.subr.mxu0 0.0
        %1139 = vmatpush1.msra.mxu0 0.0
        %1140 = vmatprep.subr.mxu0 0.0
        %1141 = vmatpush1.msra.mxu0 0.0
        %1142 = vmatprep.subr.mxu0 0.0
        %1143 = vmatpush1.msra.mxu0 0.0
        %1144 = vmatprep.subr.mxu0 0.0
        %1145 = vmatpush1.msra.mxu0 0.0
        %1146 = vmatprep.subr.mxu0 0.0
        %1147 = vmatpush1.msra.mxu0 0.0
        %1148 = vmatprep.subr.mxu0 0.0
        %1149 = vmatpush1.msra.mxu0 0.0
        %1150 = vmatprep.subr.mxu0 0.0
        %1151 = vmatpush1.msra.mxu0 0.0
        %1152 = vmatprep.subr.mxu0 0.0
        %1153 = vmatpush1.msra.mxu0 0.0
        %1154 = vmatprep.subr.mxu0 0.0
        %1155 = vmatpush1.msra.mxu0 0.0
        %1156 = vmatprep.subr.mxu0 0.0
        %1157 = vmatpush1.msra.mxu0 0.0
        %1158 = vmatprep.subr.mxu0 0.0
        %1159 = vmatpush1.msra.mxu0 0.0
        %1160 = vmatprep.subr.mxu0 0.0
        %1161 = vmatpush1.msra.mxu0 %v1128
        %1162 = vmatprep.subr.mxu0 0.0
        %1163 = vmatpush2.msra.mxu0 0.0
        %1164 = vmatprep.subr.mxu0 0.0
        %1165 = vmatpush2.msra.mxu0 0.0
        %1166 = vmatprep.subr.mxu0 0.0
        %1167 = vmatpush2.msra.mxu0 0.0
        %1168 = vmatprep.subr.mxu0 0.0
        %1169 = vmatpush2.msra.mxu0 0.0
        %1170 = vmatprep.subr.mxu0 0.0
        %1171 = vmatpush2.msra.mxu0 0.0
        %1172 = vmatprep.subr.mxu0 0.0
        %1173 = vmatpush2.msra.mxu0 0.0
        %1174 = vmatprep.subr.mxu0 0.0
        %1175 = vmatpush2.msra.mxu0 0.0
        %1176 = vmatprep.subr.mxu0 0.0
        %1177 = vmatpush2.msra.mxu0 0.0
        %1178 = vmatprep.subr.mxu0 0.0
        %1179 = vmatpush2.msra.mxu0 0.0
        %1180 = vmatprep.subr.mxu0 0.0
        %1181 = vmatpush2.msra.mxu0 0.0
        %1182 = vmatprep.subr.mxu0 0.0
        %1183 = vmatpush2.msra.mxu0 0.0
        %1184 = vmatprep.subr.mxu0 0.0
        %1185 = vmatpush2.msra.mxu0 0.0
        %1186 = vmatprep.subr.mxu0 0.0
        %1187 = vmatpush2.msra.mxu0 0.0
        %1188 = vmatprep.subr.mxu0 0.0
        %1189 = vmatpush2.msra.mxu0 0.0
        %1190 = vmatprep.subr.mxu0 0.0
        %1191 = vmatpush2.msra.mxu0 0.0
        %1192 = vmatprep.subr.mxu0 0.0
        %1193 = vmatpush2.msra.mxu0 0.0
        %1194 = vmatprep.mubr.f32.mxu0 0.0
        %1195 = vmatmul.mubr.f32.gmra.mxu0 %v1125
        %v1196 = vpop.f32.mrf.mxu0
        %v1197 = vadd.f32 0.0, %v1196
        %v1198 = vpop.f32.mrf.mxu0
        %1199 = vdwg.mxu0
        %v1200 = vadd.f32 %v1120, %v1197
        %v1201 = vld [vmem:[%s2] sm:$0xff]
        %1203 = vset.pattern.permute.xlu0 0
        %1204 = vperm.xlu0 %1203, %v1201
        %v1205 = vpop.permute.xlu0 %1204
        %v1207 = vadd.f32 %v1200, %v1205
        %v1208 = vmul.f32 %v1207, 0.5
        %v1209 = vmul.f32 %v1207, 0.70710677
        %v1210 = verf.f32.pop %v1209
        %v1211 = vadd.f32 %v1210, 1.0
        %v1212 = vmul.f32 %v1208, %v1211
        %1213 = vrot.lane.b32.xlu0 %v1212, 16
        %v1214 = vpop.permute.xlu0 %1213
        %v1215 = vsel %vm288, %v1214, %v1212
        %1216 = vrot.lane.b32.xlu0 %v1215, 16
        %v1217 = vpop.permute.xlu0 %1216
        %v1218 = vsel %vm288, %v1217, %v1212
        %1220 = vrot.lane.b32.xlu0 %v1218, 113
        %v1221 = vpop.permute.xlu0 %1220
        %v1223 = vsel %vm287, 0.0, %v1221
        %1224 = vrot.lane.b32.xlu0 %v1218, 127
        %v1225 = vpop.permute.xlu0 %1224
        %v1227 = vsel %vm300, 0.0, %v1225
        %v1228 = vld [vmem:[%s3] sm:$0xff]
        %v1229 = vld [vmem:[%s569] sm:$0xff]
        %v1231 = vsel %vm571, %v1229, 0
        %1233 = vmatprep.subr.mxu0 0.0
        %1234 = vmatpush1.msra.mxu0 0.0
        %1235 = vmatprep.subr.mxu0 0.0
        %1236 = vmatpush1.msra.mxu0 0.0
        %1237 = vmatprep.subr.mxu0 0.0
        %1238 = vmatpush1.msra.mxu0 0.0
        %1239 = vmatprep.subr.mxu0 0.0
        %1240 = vmatpush1.msra.mxu0 0.0
        %1241 = vmatprep.subr.mxu0 0.0
        %1242 = vmatpush1.msra.mxu0 0.0
        %1243 = vmatprep.subr.mxu0 0.0
        %1244 = vmatpush1.msra.mxu0 0.0
        %1245 = vmatprep.subr.mxu0 0.0
        %1246 = vmatpush1.msra.mxu0 0.0
        %1247 = vmatprep.subr.mxu0 0.0
        %1248 = vmatpush1.msra.mxu0 0.0
        %1249 = vmatprep.subr.mxu0 0.0
        %1250 = vmatpush1.msra.mxu0 0.0
        %1251 = vmatprep.subr.mxu0 0.0
        %1252 = vmatpush1.msra.mxu0 0.0
        %1253 = vmatprep.subr.mxu0 0.0
        %1254 = vmatpush1.msra.mxu0 0.0
        %1255 = vmatprep.subr.mxu0 0.0
        %1256 = vmatpush1.msra.mxu0 0.0
        %1257 = vmatprep.subr.mxu0 0.0
        %1258 = vmatpush1.msra.mxu0 0.0
        %1259 = vmatprep.subr.mxu0 0.0
        %1260 = vmatpush1.msra.mxu0 0.0
        %1261 = vmatprep.subr.mxu0 0.0
        %1262 = vmatpush1.msra.mxu0 0.0
        %1263 = vmatprep.subr.mxu0 0.0
        %1264 = vmatpush1.msra.mxu0 %v1212
        %1265 = vmatprep.subr.mxu0 0.0
        %1266 = vmatpush2.msra.mxu0 0.0
        %1267 = vmatprep.subr.mxu0 0.0
        %1268 = vmatpush2.msra.mxu0 0.0
        %1269 = vmatprep.subr.mxu0 0.0
        %1270 = vmatpush2.msra.mxu0 0.0
        %1271 = vmatprep.subr.mxu0 0.0
        %1272 = vmatpush2.msra.mxu0 0.0
        %1273 = vmatprep.subr.mxu0 0.0
        %1274 = vmatpush2.msra.mxu0 0.0
        %1275 = vmatprep.subr.mxu0 0.0
        %1276 = vmatpush2.msra.mxu0 0.0
        %1277 = vmatprep.subr.mxu0 0.0
        %1278 = vmatpush2.msra.mxu0 0.0
        %1279 = vmatprep.subr.mxu0 0.0
        %1280 = vmatpush2.msra.mxu0 0.0
        %1281 = vmatprep.subr.mxu0 0.0
        %1282 = vmatpush2.msra.mxu0 0.0
        %1283 = vmatprep.subr.mxu0 0.0
        %1284 = vmatpush2.msra.mxu0 0.0
        %1285 = vmatprep.subr.mxu0 0.0
        %1286 = vmatpush2.msra.mxu0 0.0
        %1287 = vmatprep.subr.mxu0 0.0
        %1288 = vmatpush2.msra.mxu0 0.0
        %1289 = vmatprep.subr.mxu0 0.0
        %1290 = vmatpush2.msra.mxu0 0.0
        %1291 = vmatprep.subr.mxu0 0.0
        %1292 = vmatpush2.msra.mxu0 0.0
        %1293 = vmatprep.subr.mxu0 0.0
        %1294 = vmatpush2.msra.mxu0 0.0
        %1295 = vmatprep.subr.mxu0 0.0
        %1296 = vmatpush2.msra.mxu0 0.0
        %1297 = vmatprep.mubr.f32.mxu0 0.0
        %1298 = vmatmul.mubr.f32.gmra.mxu0 %v1231
        %v1299 = vpop.f32.mrf.mxu0
        %v1300 = vadd.f32 0.0, %v1299
        %v1301 = vpop.f32.mrf.mxu0
        %1302 = vdwg.mxu0
        %v1304 = vsel %vm571, %v1228, 0
        %1306 = vmatprep.subr.mxu0 0.0
        %1307 = vmatpush1.msra.mxu0 0.0
        %1308 = vmatprep.subr.mxu0 0.0
        %1309 = vmatpush1.msra.mxu0 0.0
        %1310 = vmatprep.subr.mxu0 0.0
        %1311 = vmatpush1.msra.mxu0 0.0
        %1312 = vmatprep.subr.mxu0 0.0
        %1313 = vmatpush1.msra.mxu0 0.0
        %1314 = vmatprep.subr.mxu0 0.0
        %1315 = vmatpush1.msra.mxu0 0.0
        %1316 = vmatprep.subr.mxu0 0.0
        %1317 = vmatpush1.msra.mxu0 0.0
        %1318 = vmatprep.subr.mxu0 0.0
        %1319 = vmatpush1.msra.mxu0 0.0
        %1320 = vmatprep.subr.mxu0 0.0
        %1321 = vmatpush1.msra.mxu0 0.0
        %1322 = vmatprep.subr.mxu0 0.0
        %1323 = vmatpush1.msra.mxu0 0.0
        %1324 = vmatprep.subr.mxu0 0.0
        %1325 = vmatpush1.msra.mxu0 0.0
        %1326 = vmatprep.subr.mxu0 0.0
        %1327 = vmatpush1.msra.mxu0 0.0
        %1328 = vmatprep.subr.mxu0 0.0
        %1329 = vmatpush1.msra.mxu0 0.0
        %1330 = vmatprep.subr.mxu0 0.0
        %1331 = vmatpush1.msra.mxu0 0.0
        %1332 = vmatprep.subr.mxu0 0.0
        %1333 = vmatpush1.msra.mxu0 0.0
        %1334 = vmatprep.subr.mxu0 0.0
        %1335 = vmatpush1.msra.mxu0 0.0
        %1336 = vmatprep.subr.mxu0 0.0
        %1337 = vmatpush1.msra.mxu0 %v1223
        %1338 = vmatprep.subr.mxu0 0.0
        %1339 = vmatpush2.msra.mxu0 0.0
        %1340 = vmatprep.subr.mxu0 0.0
        %1341 = vmatpush2.msra.mxu0 0.0
        %1342 = vmatprep.subr.mxu0 0.0
        %1343 = vmatpush2.msra.mxu0 0.0
        %1344 = vmatprep.subr.mxu0 0.0
        %1345 = vmatpush2.msra.mxu0 0.0
        %1346 = vmatprep.subr.mxu0 0.0
        %1347 = vmatpush2.msra.mxu0 0.0
        %1348 = vmatprep.subr.mxu0 0.0
        %1349 = vmatpush2.msra.mxu0 0.0
        %1350 = vmatprep.subr.mxu0 0.0
        %1351 = vmatpush2.msra.mxu0 0.0
        %1352 = vmatprep.subr.mxu0 0.0
        %1353 = vmatpush2.msra.mxu0 0.0
        %1354 = vmatprep.subr.mxu0 0.0
        %1355 = vmatpush2.msra.mxu0 0.0
        %1356 = vmatprep.subr.mxu0 0.0
        %1357 = vmatpush2.msra.mxu0 0.0
        %1358 = vmatprep.subr.mxu0 0.0
        %1359 = vmatpush2.msra.mxu0 0.0
        %1360 = vmatprep.subr.mxu0 0.0
        %1361 = vmatpush2.msra.mxu0 0.0
        %1362 = vmatprep.subr.mxu0 0.0
        %1363 = vmatpush2.msra.mxu0 0.0
        %1364 = vmatprep.subr.mxu0 0.0
        %1365 = vmatpush2.msra.mxu0 0.0
        %1366 = vmatprep.subr.mxu0 0.0
        %1367 = vmatpush2.msra.mxu0 0.0
        %1368 = vmatprep.subr.mxu0 0.0
        %1369 = vmatpush2.msra.mxu0 0.0
        %1370 = vmatprep.mubr.f32.mxu0 0.0
        %1371 = vmatmul.mubr.f32.gmra.mxu0 %v1304
        %v1372 = vpop.f32.mrf.mxu0
        %v1373 = vadd.f32 %v1300, %v1372
        %v1374 = vpop.f32.mrf.mxu0
        %1375 = vdwg.mxu0
        %v1376 = vld [vmem:[%s718] sm:$0xff]
        %v1378 = vsel %vm571, %v1376, 0
        %1380 = vmatprep.subr.mxu0 0.0
        %1381 = vmatpush1.msra.mxu0 0.0
        %1382 = vmatprep.subr.mxu0 0.0
        %1383 = vmatpush1.msra.mxu0 0.0
        %1384 = vmatprep.subr.mxu0 0.0
        %1385 = vmatpush1.msra.mxu0 0.0
        %1386 = vmatprep.subr.mxu0 0.0
        %1387 = vmatpush1.msra.mxu0 0.0
        %1388 = vmatprep.subr.mxu0 0.0
        %1389 = vmatpush1.msra.mxu0 0.0
        %1390 = vmatprep.subr.mxu0 0.0
        %1391 = vmatpush1.msra.mxu0 0.0
        %1392 = vmatprep.subr.mxu0 0.0
        %1393 = vmatpush1.msra.mxu0 0.0
        %1394 = vmatprep.subr.mxu0 0.0
        %1395 = vmatpush1.msra.mxu0 0.0
        %1396 = vmatprep.subr.mxu0 0.0
        %1397 = vmatpush1.msra.mxu0 0.0
        %1398 = vmatprep.subr.mxu0 0.0
        %1399 = vmatpush1.msra.mxu0 0.0
        %1400 = vmatprep.subr.mxu0 0.0
        %1401 = vmatpush1.msra.mxu0 0.0
        %1402 = vmatprep.subr.mxu0 0.0
        %1403 = vmatpush1.msra.mxu0 0.0
        %1404 = vmatprep.subr.mxu0 0.0
        %1405 = vmatpush1.msra.mxu0 0.0
        %1406 = vmatprep.subr.mxu0 0.0
        %1407 = vmatpush1.msra.mxu0 0.0
        %1408 = vmatprep.subr.mxu0 0.0
        %1409 = vmatpush1.msra.mxu0 0.0
        %1410 = vmatprep.subr.mxu0 0.0
        %1411 = vmatpush1.msra.mxu0 %v1227
        %1412 = vmatprep.subr.mxu0 0.0
        %1413 = vmatpush2.msra.mxu0 0.0
        %1414 = vmatprep.subr.mxu0 0.0
        %1415 = vmatpush2.msra.mxu0 0.0
        %1416 = vmatprep.subr.mxu0 0.0
        %1417 = vmatpush2.msra.mxu0 0.0
        %1418 = vmatprep.subr.mxu0 0.0
        %1419 = vmatpush2.msra.mxu0 0.0
        %1420 = vmatprep.subr.mxu0 0.0
        %1421 = vmatpush2.msra.mxu0 0.0
        %1422 = vmatprep.subr.mxu0 0.0
        %1423 = vmatpush2.msra.mxu0 0.0
        %1424 = vmatprep.subr.mxu0 0.0
        %1425 = vmatpush2.msra.mxu0 0.0
        %1426 = vmatprep.subr.mxu0 0.0
        %1427 = vmatpush2.msra.mxu0 0.0
        %1428 = vmatprep.subr.mxu0 0.0
        %1429 = vmatpush2.msra.mxu0 0.0
        %1430 = vmatprep.subr.mxu0 0.0
        %1431 = vmatpush2.msra.mxu0 0.0
        %1432 = vmatprep.subr.mxu0 0.0
        %1433 = vmatpush2.msra.mxu0 0.0
        %1434 = vmatprep.subr.mxu0 0.0
        %1435 = vmatpush2.msra.mxu0 0.0
        %1436 = vmatprep.subr.mxu0 0.0
        %1437 = vmatpush2.msra.mxu0 0.0
        %1438 = vmatprep.subr.mxu0 0.0
        %1439 = vmatpush2.msra.mxu0 0.0
        %1440 = vmatprep.subr.mxu0 0.0
        %1441 = vmatpush2.msra.mxu0 0.0
        %1442 = vmatprep.subr.mxu0 0.0
        %1443 = vmatpush2.msra.mxu0 0.0
        %1444 = vmatprep.mubr.f32.mxu0 0.0
        %1445 = vmatmul.mubr.f32.gmra.mxu0 %v1378
        %v1446 = vpop.f32.mrf.mxu0
        %v1447 = vadd.f32 0.0, %v1446
        %v1448 = vpop.f32.mrf.mxu0
        %1449 = vdwg.mxu0
        %v1450 = vadd.f32 %v1373, %v1447
        %v1451 = vld [vmem:[%s4] sm:$0xff]
        %1453 = vset.pattern.permute.xlu0 0
        %1454 = vperm.xlu0 %1453, %v1451
        %v1455 = vpop.permute.xlu0 %1454
        %v1457 = vadd.f32 %v1450, %v1455
        %v1458 = vmul.f32 %v1457, 0.5
        %v1459 = vmul.f32 %v1457, 0.70710677
        %v1460 = verf.f32.pop %v1459
        %v1461 = vadd.f32 %v1460, 1.0
        %v1462 = vmul.f32 %v1458, %v1461
        %v1464 = vsel %vm806, %v1462, 0
        %1466 = vmatprep.subr.mxu0 0.0
        %1467 = vmatpush1.msra.mxu0 0.0
        %1468 = vmatprep.subr.mxu0 0.0
        %1469 = vmatpush1.msra.mxu0 0.0
        %1470 = vmatprep.subr.mxu0 0.0
        %1471 = vmatpush1.msra.mxu0 0.0
        %1472 = vmatprep.subr.mxu0 0.0
        %1473 = vmatpush1.msra.mxu0 0.0
        %1474 = vmatprep.subr.mxu0 0.0
        %1475 = vmatpush1.msra.mxu0 0.0
        %1476 = vmatprep.subr.mxu0 0.0
        %1477 = vmatpush1.msra.mxu0 0.0
        %1478 = vmatprep.subr.mxu0 0.0
        %1479 = vmatpush1.msra.mxu0 0.0
        %1480 = vmatprep.subr.mxu0 0.0
        %1481 = vmatpush1.msra.mxu0 0.0
        %1482 = vmatprep.subr.mxu0 0.0
        %1483 = vmatpush1.msra.mxu0 0.0
        %1484 = vmatprep.subr.mxu0 0.0
        %1485 = vmatpush1.msra.mxu0 0.0
        %1486 = vmatprep.subr.mxu0 0.0
        %1487 = vmatpush1.msra.mxu0 0.0
        %1488 = vmatprep.subr.mxu0 0.0
        %1489 = vmatpush1.msra.mxu0 0.0
        %1490 = vmatprep.subr.mxu0 0.0
        %1491 = vmatpush1.msra.mxu0 0.0
        %1492 = vmatprep.subr.mxu0 0.0
        %1493 = vmatpush1.msra.mxu0 0.0
        %1494 = vmatprep.subr.mxu0 0.0
        %1495 = vmatpush1.msra.mxu0 %v281
        %1496 = vmatprep.subr.mxu0 0.0
        %1497 = vmatpush1.msra.mxu0 %v280
        %1498 = vmatprep.subr.mxu0 0.0
        %1499 = vmatpush2.msra.mxu0 0.0
        %1500 = vmatprep.subr.mxu0 0.0
        %1501 = vmatpush2.msra.mxu0 0.0
        %1502 = vmatprep.subr.mxu0 0.0
        %1503 = vmatpush2.msra.mxu0 0.0
        %1504 = vmatprep.subr.mxu0 0.0
        %1505 = vmatpush2.msra.mxu0 0.0
        %1506 = vmatprep.subr.mxu0 0.0
        %1507 = vmatpush2.msra.mxu0 0.0
        %1508 = vmatprep.subr.mxu0 0.0
        %1509 = vmatpush2.msra.mxu0 0.0
        %1510 = vmatprep.subr.mxu0 0.0
        %1511 = vmatpush2.msra.mxu0 0.0
        %1512 = vmatprep.subr.mxu0 0.0
        %1513 = vmatpush2.msra.mxu0 0.0
        %1514 = vmatprep.subr.mxu0 0.0
        %1515 = vmatpush2.msra.mxu0 0.0
        %1516 = vmatprep.subr.mxu0 0.0
        %1517 = vmatpush2.msra.mxu0 0.0
        %1518 = vmatprep.subr.mxu0 0.0
        %1519 = vmatpush2.msra.mxu0 0.0
        %1520 = vmatprep.subr.mxu0 0.0
        %1521 = vmatpush2.msra.mxu0 0.0
        %1522 = vmatprep.subr.mxu0 0.0
        %1523 = vmatpush2.msra.mxu0 0.0
        %1524 = vmatprep.subr.mxu0 0.0
        %1525 = vmatpush2.msra.mxu0 0.0
        %1526 = vmatprep.subr.mxu0 0.0
        %1527 = vmatpush2.msra.mxu0 0.0
        %1528 = vmatprep.subr.mxu0 0.0
        %1529 = vmatpush2.msra.mxu0 0.0
        %1530 = vmatprep.mubr.f32.mxu0 0.0
        %1531 = vmatmul.mubr.f32.gmra.mxu0 %v1464
        %v1532 = vpop.f32.mrf.mxu0
        %v1533 = vadd.f32 0.0, %v1532
        %v1534 = vpop.f32.mrf.mxu0
        %1535 = vdwg.mxu0
        %1536 = vmatprep.subr.mxu0 0.0
        %1537 = vmatpush1.msra.mxu0 0.0
        %1538 = vmatprep.subr.mxu0 0.0
        %1539 = vmatpush1.msra.mxu0 0.0
        %1540 = vmatprep.subr.mxu0 0.0
        %1541 = vmatpush1.msra.mxu0 0.0
        %1542 = vmatprep.subr.mxu0 0.0
        %1543 = vmatpush1.msra.mxu0 0.0
        %1544 = vmatprep.subr.mxu0 0.0
        %1545 = vmatpush1.msra.mxu0 0.0
        %1546 = vmatprep.subr.mxu0 0.0
        %1547 = vmatpush1.msra.mxu0 0.0
        %1548 = vmatprep.subr.mxu0 0.0
        %1549 = vmatpush1.msra.mxu0 0.0
        %1550 = vmatprep.subr.mxu0 0.0
        %1551 = vmatpush1.msra.mxu0 0.0
        %1552 = vmatprep.subr.mxu0 0.0
        %1553 = vmatpush1.msra.mxu0 0.0
        %1554 = vmatprep.subr.mxu0 0.0
        %1555 = vmatpush1.msra.mxu0 0.0
        %1556 = vmatprep.subr.mxu0 0.0
        %1557 = vmatpush1.msra.mxu0 0.0
        %1558 = vmatprep.subr.mxu0 0.0
        %1559 = vmatpush1.msra.mxu0 0.0
        %1560 = vmatprep.subr.mxu0 0.0
        %1561 = vmatpush1.msra.mxu0 0.0
        %1562 = vmatprep.subr.mxu0 0.0
        %1563 = vmatpush1.msra.mxu0 0.0
        %1564 = vmatprep.subr.mxu0 0.0
        %1565 = vmatpush1.msra.mxu0 %v283
        %1566 = vmatprep.subr.mxu0 0.0
        %1567 = vmatpush1.msra.mxu0 %v282
        %1568 = vmatprep.subr.mxu0 0.0
        %1569 = vmatpush2.msra.mxu0 0.0
        %1570 = vmatprep.subr.mxu0 0.0
        %1571 = vmatpush2.msra.mxu0 0.0
        %1572 = vmatprep.subr.mxu0 0.0
        %1573 = vmatpush2.msra.mxu0 0.0
        %1574 = vmatprep.subr.mxu0 0.0
        %1575 = vmatpush2.msra.mxu0 0.0
        %1576 = vmatprep.subr.mxu0 0.0
        %1577 = vmatpush2.msra.mxu0 0.0
        %1578 = vmatprep.subr.mxu0 0.0
        %1579 = vmatpush2.msra.mxu0 0.0
        %1580 = vmatprep.subr.mxu0 0.0
        %1581 = vmatpush2.msra.mxu0 0.0
        %1582 = vmatprep.subr.mxu0 0.0
        %1583 = vmatpush2.msra.mxu0 0.0
        %1584 = vmatprep.subr.mxu0 0.0
        %1585 = vmatpush2.msra.mxu0 0.0
        %1586 = vmatprep.subr.mxu0 0.0
        %1587 = vmatpush2.msra.mxu0 0.0
        %1588 = vmatprep.subr.mxu0 0.0
        %1589 = vmatpush2.msra.mxu0 0.0
        %1590 = vmatprep.subr.mxu0 0.0
        %1591 = vmatpush2.msra.mxu0 0.0
        %1592 = vmatprep.subr.mxu0 0.0
        %1593 = vmatpush2.msra.mxu0 0.0
        %1594 = vmatprep.subr.mxu0 0.0
        %1595 = vmatpush2.msra.mxu0 0.0
        %1596 = vmatprep.subr.mxu0 0.0
        %1597 = vmatpush2.msra.mxu0 0.0
        %1598 = vmatprep.subr.mxu0 0.0
        %1599 = vmatpush2.msra.mxu0 0.0
        %1600 = vmatprep.mubr.f32.mxu0 0.0
        %1601 = vmatmul.mubr.f32.gmra.mxu0 %v1464
        %v1602 = vpop.f32.mrf.mxu0
        %v1603 = vadd.f32 0.0, %v1602
        %v1604 = vpop.f32.mrf.mxu0
        %1605 = vdwg.mxu0
        %v1606 = vmax.f32 %v1533, %v1603
        %s1607 = scalar_lea.vmem %s272, 8 [#allocation2]
        %1608 = vst.msk [vmem:[%s1607] sm:$0xff] %vm571, %v1606
        %s1609 = sand.u32 %s181, 1
        %s1610 = scalar_lea.sflag [#allocation3], %s1609
        %s1611 = sand.u32 %s181, 1
        %s1612 = smul.addr %s1611, 16
        %s1613 = scalar_lea.vmem [#allocation2], %s1612
        // Predicated region
        $region49: #{tpu_custom_call.1} parent=47 // pred_check
          %p1614 = pneg %p191
        $region50: #{tpu_custom_call.1} parent=47 // pred_check_branch
          %1616 = sbr.rel (%p1614) target = $region52
        $region51: #{tpu_custom_call.1} parent=47 // pred_region
          %s1617 = smul.u32 2, %s21
          %s1619 = ssub.s32 256, 256
          %1620 = vsyncadd %s1610, %s1619
          %s1621 = smul.addr %s1617, 128
          %s1622 = scalar_lea.hbm %s7, %s1621
          %s1623 = sshll.u32 %s1613, 4
          %s1624 = int_to_ptr.vmem [resolvable:$true] %s1623
          %1629 = dma.vmem_to_hbm [thread:$0]  %s1624, 256, %s1622, %s1610, 128, 128, 8
        $region52: #{tpu_custom_call.1} parent=47 // pred_fallthru
          _
      $region48: #{tpu_custom_call.1} parent=5 // pred_fallthru
        _
      %p1630 = scmp.le.s32.totalorder 2, %s16
      // Predicated region
      $region53: #{tpu_custom_call.1} parent=5 // pred_check
        %p1631 = pneg %p1630
      $region54: #{tpu_custom_call.1} parent=5 // pred_check_branch
        %1633 = sbr.rel (%p1631) target = $region56
      $region55: #{tpu_custom_call.1} parent=5 // pred_region
        %s1634 = ssub.s32 %s16, 2
        // Predicated region
        $region57: #{tpu_custom_call.1} parent=55 // pred_check
          %p1635 = pneg %p197
        $region58: #{tpu_custom_call.1} parent=55 // pred_check_branch
          %1637 = sbr.rel (%p1635) target = $region60
        $region59: #{tpu_custom_call.1} parent=55 // pred_region
          %s1638 = sand.u32 %s182, 1
          %s1639 = scalar_lea.sflag [#allocation3], %s1638
          %s1640 = sand.u32 %s182, 1
          %s1641 = smul.addr %s1640, 16
          %s1642 = scalar_lea.vmem [#allocation2], %s1641
          %1643 = dma.done %s1639, 256
        $region60: #{tpu_custom_call.1} parent=55 // pred_fallthru
          _
      $region56: #{tpu_custom_call.1} parent=5 // pred_fallthru
        _
    $region6: #{tpu_custom_call.1} parent=1 // loop_footer
      %s20 = sadd.s32 1, %s16
    $region7: #{tpu_custom_call.1} parent=1 // loop_footer_branch
      %15 = sbr.rel target = $region3
    $region8: #{tpu_custom_call.1} parent=1 // loop_exit
      _
    %1644 = vsyncpa [#allocation3], 1
    %s1645 = scalar_lea.sflag [#allocation3], 1
    %1646 = vsyncpa %s1645, 1

</llo_original>
